<compile_context>
chip_gen: v7x
topology: tpu7x:2x2x1
jax: 0.10.0
libtpu: 0.0.40
codegen_flags: <defaults>
</compile_context>

<pallas_src>
import functools

import jax
import jax.numpy as jnp
from jax import lax
from jax.experimental import pallas as pl
from jax.experimental.pallas import tpu as pltpu

N_ITER = 8                  # ISTC iterations
LAMBDA_STAR_RATIO = 0.05    # final-threshold / initial-threshold ratio
EPS = 1e-6
LANE = 128                  # lane-dense padding target for feature dims
TILE_R_MAX = 512            # max rows (spatial positions) per grid step


def _round_up(a, b):
    return (a + b - 1) // b * b


def sparse_scatnet_kernel(patch_ref, wscat_ref, wproj_ref, d_ref, g_ref,
                          pooled_ref, *, b_img):
    """One grid step = `b_img` images x `tile_r` spatial positions.

    patch_ref : [b_img*tile_r, F]  bf16  unfolded 4x4 patches (row = position)
    wscat_ref : [F, Ks]            bf16  scattering filter bank
    wproj_ref : [Ks, P]            bf16  1x1-conv projection
    d_ref     : [P, M]             bf16  dictionary (unit-norm atoms)
    g_ref     : [M, M]             bf16  Gram matrix D^T D
    pooled_ref: [b_img, M]         f32   per-image spatial sum of ISTC codes
    """
    j = pl.program_id(1)

    @pl.when(j == 0)
    def _():
        pooled_ref[...] = jnp.zeros_like(pooled_ref)

    rows = patch_ref.shape[0]
    tile_r = rows // b_img

    # ---- scattering-like: fixed filter bank + modulus (f32 accumulate) ----
    s = jnp.abs(jnp.dot(patch_ref[...], wscat_ref[...],
                        preferred_element_type=jnp.float32))           # [R, Ks]

    # ---- linear_proj: 1x1 conv + per-position L2 normalization (f32) ------
    p = jnp.dot(s.astype(jnp.bfloat16), wproj_ref[...],
                preferred_element_type=jnp.float32)                    # [R, P]
    inv_norm = lax.rsqrt(jnp.sum(p * p, axis=-1, keepdims=True) + EPS)
    p = p * inv_norm

    # ---- ISTC: ISTA with Gram matrix, geometric lambda decay --------------
    c0 = jnp.dot(p.astype(jnp.bfloat16), d_ref[...],
                 preferred_element_type=jnp.float32)                   # [R, M]
    lam0 = jnp.max(jnp.abs(c0), axis=-1, keepdims=True)                # [R, 1]
    # Hoisted lane broadcast (JAX does not CSE broadcast_in_dim): broadcast
    # once, then per-iteration scaling is a plain VPU multiply.
    lam_full = jnp.broadcast_to(lam0, c0.shape)                        # [R, M]

    gamma = LAMBDA_STAR_RATIO ** (1.0 / N_ITER)
    z = jnp.zeros_like(c0)
    for t in range(N_ITER):   # fully unrolled; lambda factors are constants
        # z + (p - z D^T) D  ==  z + c0 - z G
        u = z + c0 - jnp.dot(z.astype(jnp.bfloat16), g_ref[...],
                             preferred_element_type=jnp.float32)
        lam = lam_full * jnp.float32(gamma ** (t + 1))
        z = u - jnp.clip(u, -lam, lam)            # soft threshold

    # ---- per-image spatial-sum pooling, accumulated across row blocks -----
    zb = z.reshape(b_img, tile_r, z.shape[-1])    # sublane-preserving split
    pooled_ref[...] += jnp.sum(zb, axis=1)


def sparse_scatnet(x, params):
    """x: NCHW float32; returns logits [N, n_classes]."""
    w_scat, w_proj, d, w_cls, b_cls = params
    n, c, h, w = x.shape
    ps = 4
    assert h % ps == 0 and w % ps == 0, "spatial dims must be multiples of 4"
    sh, sw = h // ps, w // ps
    s_per_img = sh * sw
    f = c * ps * ps

    # Unfold non-overlapping 4x4 patches, PyTorch nn.Unfold (C, kh, kw) order.
    patches = x.reshape(n, c, sh, ps, sw, ps)
    patches = patches.transpose(0, 2, 4, 1, 3, 5).reshape(n, s_per_img, f)

    # ---- row / image tiling -------------------------------------------------
    # Zero-padded rows / images yield zero ISTC codes, so the pooled sums are
    # unaffected; the mean uses the true S and padded images are sliced away.
    s_pad8 = _round_up(s_per_img, 8)
    if s_pad8 <= TILE_R_MAX:
        tile_r = s_pad8
        b_img_max = max(1, TILE_R_MAX // tile_r)   # pack small images per step
    else:
        tile_r = TILE_R_MAX
        b_img_max = 1
    b_img = min(n, b_img_max)
    if n >= 2:
        # Keep >=2 image blocks so the "parallel" axis can shard across both
        # TensorCores on v7x (no effect on v5e/v6e).
        b_img = max(1, min(b_img, -(-n // 2)))
    n_pad = _round_up(n, b_img)
    s_pad = _round_up(s_pad8, tile_r)
    n_blocks = s_pad // tile_r
    n_img_blocks = n_pad // b_img
    rows_per_step = b_img * tile_r

    patches = jnp.pad(patches, ((0, n_pad - n), (0, s_pad - s_per_img), (0, 0)))
    patches = patches.astype(jnp.bfloat16).reshape(
        n_img_blocks * n_blocks, rows_per_step, f)

    # ---- lane-dense (128-padded) feature dims; zero padding is exact --------
    ks, pdim, m = w_scat.shape[1], w_proj.shape[1], d.shape[1]
    ks_p = _round_up(ks, LANE)
    p_p = _round_up(pdim, LANE)
    m_p = _round_up(m, LANE)
    w_scat_p = jnp.pad(w_scat, ((0, 0), (0, ks_p - ks))).astype(jnp.bfloat16)
    w_proj_p = jnp.pad(w_proj, ((0, ks_p - ks), (0, p_p - pdim))
                       ).astype(jnp.bfloat16)
    d_pad = jnp.pad(d, ((0, p_p - pdim), (0, m_p - m)))
    g_p = (d_pad.T @ d_pad).astype(jnp.bfloat16)          # Gram matrix
    d_p = d_pad.astype(jnp.bfloat16)

    # ---- VMEM limit from the actual footprint (safe on v7x's 64 MiB) --------
    w_bytes = (f * ks_p + ks_p * p_p + p_p * m_p + m_p * m_p) * 2
    est = (2 * rows_per_step * f * 2               # patch block, double-buffered
           + 2 * w_bytes                           # weights (conservative x2)
           + 2 * b_img * m_p * 4                   # pooled block
           + 8 * rows_per_step * max(ks_p, p_p, m_p) * 4)   # live f32 temps
    vmem_limit = int(min(32 * 1024 * 1024, max(8 * 1024 * 1024, 2 * est)))

    def full2d(shape):
        return pl.BlockSpec(shape, lambda i, j: (0, 0))

    kernel = functools.partial(sparse_scatnet_kernel, b_img=b_img)

    pooled_sum = pl.pallas_call(
        kernel,
        out_shape=jax.ShapeDtypeStruct((n_img_blocks, b_img, m_p), jnp.float32),
        grid=(n_img_blocks, n_blocks),
        in_specs=[
            pl.BlockSpec((pl.Squeezed(), rows_per_step, f),
                         lambda i, j: (i * n_blocks + j, 0, 0)),
            full2d(w_scat_p.shape),
            full2d(w_proj_p.shape),
            full2d(d_p.shape),
            full2d(g_p.shape),
        ],
        out_specs=pl.BlockSpec((pl.Squeezed(), b_img, m_p),
                               lambda i, j: (i, 0, 0)),
        compiler_params=pltpu.CompilerParams(
            dimension_semantics=("parallel", "arbitrary"),
            vmem_limit_bytes=vmem_limit),
    )(patches, w_scat_p, w_proj_p, d_p, g_p)

    # Tiny classifier ([N, M] @ [M, n_classes]) stays in plain XLA (f32).
    pooled = pooled_sum.reshape(n_pad, m_p)[:n, :m] / jnp.float32(s_per_img)
    return pooled @ w_cls + b_cls


def make_params(key, c=4, ps=4, ks=32, proj_dim=32, n_atoms=64, n_classes=10):
    k1, k2, k3, k4, k5 = jax.random.split(key, 5)
    cp = c * ps * ps
    w_scat = 0.1 * jax.random.normal(k1, (cp, ks), jnp.float32)
    w_proj = 0.1 * jax.random.normal(k2, (ks, proj_dim), jnp.float32)
    d = jax.random.normal(k3, (proj_dim, n_atoms), jnp.float32)
    d = d / (jnp.linalg.norm(d, axis=0, keepdims=True) + EPS)  # unit-norm atoms
    w_cls = 0.1 * jax.random.normal(k4, (n_atoms, n_classes), jnp.float32)
    b_cls = 0.01 * jax.random.normal(k5, (1, n_classes), jnp.float32)
    return w_scat, w_proj, d, w_cls, b_cls


if __name__ == "__main__":
    key = jax.random.PRNGKey(0)
    kx, kp = jax.random.split(key)

    # Small, self-consistent shapes: N=2, C=4, H=W=16 (NCHW).
    x = jax.random.normal(kx, (2, 4, 16, 16), jnp.float32)
    params = make_params(kp, c=4)

    logits = sparse_scatnet(x, params)
    jax.block_until_ready(logits)
    assert logits.shape == (2, 10)
    print("KERNEL_OK")
</pallas_src>

<mosaic_0001>
module attributes {stable_mosaic.version = 11 : i64} {
  func.func @sparse_scatnet_kernel(%arg0: i32, %arg1: i32, %arg2: memref<1x16x64xbf16, #tpu.memory_space<vmem>>, %arg3: memref<64x128xbf16, #tpu.memory_space<vmem>>, %arg4: memref<128x128xbf16, #tpu.memory_space<vmem>>, %arg5: memref<128x128xbf16, #tpu.memory_space<vmem>>, %arg6: memref<128x128xbf16, #tpu.memory_space<vmem>>, %arg7: memref<1x1x128xf32, #tpu.memory_space<vmem>>) attributes {dimension_semantics = [#tpu.dimension_semantics<parallel>, #tpu.dimension_semantics<arbitrary>], iteration_bounds = array<i64: 2, 1>, scalar_prefetch = 0 : i64, scratch_operands = 0 : i64, tpu.core_type = #tpu.core_type<tc>, window_params = [{transform_indices = @transform_0, window_bounds = array<i64: 1, 16, 64>}, {pipeline_mode = #tpu.pipeline_mode<synchronous>, transform_indices = @transform_1, window_bounds = array<i64: 64, 128>}, {pipeline_mode = #tpu.pipeline_mode<synchronous>, transform_indices = @transform_2, window_bounds = array<i64: 128, 128>}, {pipeline_mode = #tpu.pipeline_mode<synchronous>, transform_indices = @transform_3, window_bounds = array<i64: 128, 128>}, {pipeline_mode = #tpu.pipeline_mode<synchronous>, transform_indices = @transform_4, window_bounds = array<i64: 128, 128>}, {transform_indices = @transform_5, window_bounds = array<i64: 1, 1, 128>}]} {
    %c0_i32 = arith.constant 0 : i32
    %0 = arith.cmpi eq, %arg1, %c0_i32 : i32
    %1 = arith.extui %0 : i1 to i32
    %c0_i32_0 = arith.constant 0 : i32
    %2 = arith.cmpi ne, %1, %c0_i32_0 : i32
    scf.if %2 {
      %cst_62 = arith.constant 0.000000e+00 : f32
      %132 = vector.broadcast %cst_62 : f32 to vector<1x128xf32>
      %c0_63 = arith.constant 0 : index
      %c0_64 = arith.constant 0 : index
      %c0_65 = arith.constant 0 : index
      %133 = vector.load %arg7[%c0_63, %c0_64, %c0_65] : memref<1x1x128xf32, #tpu.memory_space<vmem>>, vector<1x1x128xf32>
      %134 = vector.shape_cast %133 : vector<1x1x128xf32> to vector<1x128xf32>
      %135 = vector.shape_cast %132 : vector<1x128xf32> to vector<1x1x128xf32>
      tpu.vector_store %arg7[%c0_63, %c0_64, %c0_65], %135 {strides = array<i32>} : memref<1x1x128xf32, #tpu.memory_space<vmem>>, vector<1x1x128xf32>,
    } else {
    }
    %c0 = arith.constant 0 : index
    %c0_1 = arith.constant 0 : index
    %c0_2 = arith.constant 0 : index
    %3 = vector.load %arg2[%c0, %c0_1, %c0_2] : memref<1x16x64xbf16, #tpu.memory_space<vmem>>, vector<1x16x64xbf16>
    %4 = vector.shape_cast %3 : vector<1x16x64xbf16> to vector<16x64xbf16>
    %c0_3 = arith.constant 0 : index
    %c0_4 = arith.constant 0 : index
    %5 = vector.load %arg3[%c0_3, %c0_4] : memref<64x128xbf16, #tpu.memory_space<vmem>>, vector<64x128xbf16>
    %cst = arith.constant dense<0.000000e+00> : vector<16x128xf32>
    %6 = tpu.matmul %4, %5, %cst {dimension_numbers = #tpu.dot_dimension_numbers<[1], [0], [0], [1], [0, 0, 1, 1], [], []>} : vector<16x64xbf16>, vector<64x128xbf16>, vector<16x128xf32> -> vector<16x128xf32>
    %7 = math.absf %6 : vector<16x128xf32>
    %8 = arith.truncf %7 : vector<16x128xf32> to vector<16x128xbf16>
    %c0_5 = arith.constant 0 : index
    %c0_6 = arith.constant 0 : index
    %9 = vector.load %arg4[%c0_5, %c0_6] : memref<128x128xbf16, #tpu.memory_space<vmem>>, vector<128x128xbf16>
    %cst_7 = arith.constant dense<0.000000e+00> : vector<16x128xf32>
    %10 = tpu.matmul %8, %9, %cst_7 {dimension_numbers = #tpu.dot_dimension_numbers<[1], [0], [0], [1], [0, 0, 1, 1], [], []>} : vector<16x128xbf16>, vector<128x128xbf16>, vector<16x128xf32> -> vector<16x128xf32>
    %11 = arith.mulf %10, %10 : vector<16x128xf32>
    %cst_8 = arith.constant dense<0.000000e+00> : vector<16xf32>
    %12 = vector.multi_reduction <add>, %11, %cst_8 [1] : vector<16x128xf32> to vector<16xf32>
    %13 = vector.shape_cast %12 : vector<16xf32> to vector<16x1xf32>
    %cst_9 = arith.constant 9.99999997E-7 : f32
    %14 = vector.broadcast %cst_9 : f32 to vector<16x1xf32>
    %15 = arith.addf %13, %14 : vector<16x1xf32>
    %16 = math.rsqrt %15 : vector<16x1xf32>
    %17 = vector.broadcast %16 : vector<16x1xf32> to vector<16x128xf32>
    %18 = arith.mulf %10, %17 : vector<16x128xf32>
    %19 = arith.truncf %18 : vector<16x128xf32> to vector<16x128xbf16>
    %c0_10 = arith.constant 0 : index
    %c0_11 = arith.constant 0 : index
    %20 = vector.load %arg5[%c0_10, %c0_11] : memref<128x128xbf16, #tpu.memory_space<vmem>>, vector<128x128xbf16>
    %cst_12 = arith.constant dense<0.000000e+00> : vector<16x128xf32>
    %21 = tpu.matmul %19, %20, %cst_12 {dimension_numbers = #tpu.dot_dimension_numbers<[1], [0], [0], [1], [0, 0, 1, 1], [], []>} : vector<16x128xbf16>, vector<128x128xbf16>, vector<16x128xf32> -> vector<16x128xf32>
    %22 = math.absf %21 : vector<16x128xf32>
    %cst_13 = arith.constant dense<0xFF800000> : vector<16xf32>
    %23 = vector.multi_reduction <maximumf>, %22, %cst_13 [1] : vector<16x128xf32> to vector<16xf32>
    %24 = vector.shape_cast %23 : vector<16xf32> to vector<16x1xf32>
    %25 = vector.shape_cast %24 : vector<16x1xf32> to vector<16x1xf32>
    %26 = vector.broadcast %25 : vector<16x1xf32> to vector<16x128xf32>
    %cst_14 = arith.constant 0.000000e+00 : f32
    %27 = vector.broadcast %cst_14 : f32 to vector<16x128xf32>
    %28 = arith.addf %27, %21 : vector<16x128xf32>
    %29 = arith.truncf %27 : vector<16x128xf32> to vector<16x128xbf16>
    %c0_15 = arith.constant 0 : index
    %c0_16 = arith.constant 0 : index
    %30 = vector.load %arg6[%c0_15, %c0_16] : memref<128x128xbf16, #tpu.memory_space<vmem>>, vector<128x128xbf16>
    %cst_17 = arith.constant dense<0.000000e+00> : vector<16x128xf32>
    %31 = tpu.matmul %29, %30, %cst_17 {dimension_numbers = #tpu.dot_dimension_numbers<[1], [0], [0], [1], [0, 0, 1, 1], [], []>} : vector<16x128xbf16>, vector<128x128xbf16>, vector<16x128xf32> -> vector<16x128xf32>
    %32 = arith.subf %28, %31 : vector<16x128xf32>
    %cst_18 = arith.constant 0.687656045 : f32
    %33 = vector.broadcast %cst_18 : f32 to vector<16x128xf32>
    %34 = arith.mulf %26, %33 : vector<16x128xf32>
    %cst_19 = arith.constant 0.000000e+00 : f32
    %35 = vector.broadcast %cst_19 : f32 to vector<16x128xf32>
    %36 = arith.subf %35, %34 : vector<16x128xf32>
    %37 = arith.maximumf %36, %32 : vector<16x128xf32>
    %38 = arith.minimumf %34, %37 : vector<16x128xf32>
    %39 = arith.subf %32, %38 : vector<16x128xf32>
    %40 = arith.addf %39, %21 : vector<16x128xf32>
    %41 = arith.truncf %39 : vector<16x128xf32> to vector<16x128xbf16>
    %c0_20 = arith.constant 0 : index
    %c0_21 = arith.constant 0 : index
    %42 = vector.load %arg6[%c0_20, %c0_21] : memref<128x128xbf16, #tpu.memory_space<vmem>>, vector<128x128xbf16>
    %cst_22 = arith.constant dense<0.000000e+00> : vector<16x128xf32>
    %43 = tpu.matmul %41, %42, %cst_22 {dimension_numbers = #tpu.dot_dimension_numbers<[1], [0], [0], [1], [0, 0, 1, 1], [], []>} : vector<16x128xbf16>, vector<128x128xbf16>, vector<16x128xf32> -> vector<16x128xf32>
    %44 = arith.subf %40, %43 : vector<16x128xf32>
    %cst_23 = arith.constant 0.472870797 : f32
    %45 = vector.broadcast %cst_23 : f32 to vector<16x128xf32>
    %46 = arith.mulf %26, %45 : vector<16x128xf32>
    %cst_24 = arith.constant 0.000000e+00 : f32
    %47 = vector.broadcast %cst_24 : f32 to vector<16x128xf32>
    %48 = arith.subf %47, %46 : vector<16x128xf32>
    %49 = arith.maximumf %48, %44 : vector<16x128xf32>
    %50 = arith.minimumf %46, %49 : vector<16x128xf32>
    %51 = arith.subf %44, %50 : vector<16x128xf32>
    %52 = arith.addf %51, %21 : vector<16x128xf32>
    %53 = arith.truncf %51 : vector<16x128xf32> to vector<16x128xbf16>
    %c0_25 = arith.constant 0 : index
    %c0_26 = arith.constant 0 : index
    %54 = vector.load %arg6[%c0_25, %c0_26] : memref<128x128xbf16, #tpu.memory_space<vmem>>, vector<128x128xbf16>
    %cst_27 = arith.constant dense<0.000000e+00> : vector<16x128xf32>
    %55 = tpu.matmul %53, %54, %cst_27 {dimension_numbers = #tpu.dot_dimension_numbers<[1], [0], [0], [1], [0, 0, 1, 1], [], []>} : vector<16x128xbf16>, vector<128x128xbf16>, vector<16x128xf32> -> vector<16x128xf32>
    %56 = arith.subf %52, %55 : vector<16x128xf32>
    %cst_28 = arith.constant 0.325172454 : f32
    %57 = vector.broadcast %cst_28 : f32 to vector<16x128xf32>
    %58 = arith.mulf %26, %57 : vector<16x128xf32>
    %cst_29 = arith.constant 0.000000e+00 : f32
    %59 = vector.broadcast %cst_29 : f32 to vector<16x128xf32>
    %60 = arith.subf %59, %58 : vector<16x128xf32>
    %61 = arith.maximumf %60, %56 : vector<16x128xf32>
    %62 = arith.minimumf %58, %61 : vector<16x128xf32>
    %63 = arith.subf %56, %62 : vector<16x128xf32>
    %64 = arith.addf %63, %21 : vector<16x128xf32>
    %65 = arith.truncf %63 : vector<16x128xf32> to vector<16x128xbf16>
    %c0_30 = arith.constant 0 : index
    %c0_31 = arith.constant 0 : index
    %66 = vector.load %arg6[%c0_30, %c0_31] : memref<128x128xbf16, #tpu.memory_space<vmem>>, vector<128x128xbf16>
    %cst_32 = arith.constant dense<0.000000e+00> : vector<16x128xf32>
    %67 = tpu.matmul %65, %66, %cst_32 {dimension_numbers = #tpu.dot_dimension_numbers<[1], [0], [0], [1], [0, 0, 1, 1], [], []>} : vector<16x128xbf16>, vector<128x128xbf16>, vector<16x128xf32> -> vector<16x128xf32>
    %68 = arith.subf %64, %67 : vector<16x128xf32>
    %cst_33 = arith.constant 0.223606795 : f32
    %69 = vector.broadcast %cst_33 : f32 to vector<16x128xf32>
    %70 = arith.mulf %26, %69 : vector<16x128xf32>
    %cst_34 = arith.constant 0.000000e+00 : f32
    %71 = vector.broadcast %cst_34 : f32 to vector<16x128xf32>
    %72 = arith.subf %71, %70 : vector<16x128xf32>
    %73 = arith.maximumf %72, %68 : vector<16x128xf32>
    %74 = arith.minimumf %70, %73 : vector<16x128xf32>
    %75 = arith.subf %68, %74 : vector<16x128xf32>
    %76 = arith.addf %75, %21 : vector<16x128xf32>
    %77 = arith.truncf %75 : vector<16x128xf32> to vector<16x128xbf16>
    %c0_35 = arith.constant 0 : index
    %c0_36 = arith.constant 0 : index
    %78 = vector.load %arg6[%c0_35, %c0_36] : memref<128x128xbf16, #tpu.memory_space<vmem>>, vector<128x128xbf16>
    %cst_37 = arith.constant dense<0.000000e+00> : vector<16x128xf32>
    %79 = tpu.matmul %77, %78, %cst_37 {dimension_numbers = #tpu.dot_dimension_numbers<[1], [0], [0], [1], [0, 0, 1, 1], [], []>} : vector<16x128xbf16>, vector<128x128xbf16>, vector<16x128xf32> -> vector<16x128xf32>
    %80 = arith.subf %76, %79 : vector<16x128xf32>
    %cst_38 = arith.constant 0.153764561 : f32
    %81 = vector.broadcast %cst_38 : f32 to vector<16x128xf32>
    %82 = arith.mulf %26, %81 : vector<16x128xf32>
    %cst_39 = arith.constant 0.000000e+00 : f32
    %83 = vector.broadcast %cst_39 : f32 to vector<16x128xf32>
    %84 = arith.subf %83, %82 : vector<16x128xf32>
    %85 = arith.maximumf %84, %80 : vector<16x128xf32>
    %86 = arith.minimumf %82, %85 : vector<16x128xf32>
    %87 = arith.subf %80, %86 : vector<16x128xf32>
    %88 = arith.addf %87, %21 : vector<16x128xf32>
    %89 = arith.truncf %87 : vector<16x128xf32> to vector<16x128xbf16>
    %c0_40 = arith.constant 0 : index
    %c0_41 = arith.constant 0 : index
    %90 = vector.load %arg6[%c0_40, %c0_41] : memref<128x128xbf16, #tpu.memory_space<vmem>>, vector<128x128xbf16>
    %cst_42 = arith.constant dense<0.000000e+00> : vector<16x128xf32>
    %91 = tpu.matmul %89, %90, %cst_42 {dimension_numbers = #tpu.dot_dimension_numbers<[1], [0], [0], [1], [0, 0, 1, 1], [], []>} : vector<16x128xbf16>, vector<128x128xbf16>, vector<16x128xf32> -> vector<16x128xf32>
    %92 = arith.subf %88, %91 : vector<16x128xf32>
    %cst_43 = arith.constant 0.105737127 : f32
    %93 = vector.broadcast %cst_43 : f32 to vector<16x128xf32>
    %94 = arith.mulf %26, %93 : vector<16x128xf32>
    %cst_44 = arith.constant 0.000000e+00 : f32
    %95 = vector.broadcast %cst_44 : f32 to vector<16x128xf32>
    %96 = arith.subf %95, %94 : vector<16x128xf32>
    %97 = arith.maximumf %96, %92 : vector<16x128xf32>
    %98 = arith.minimumf %94, %97 : vector<16x128xf32>
    %99 = arith.subf %92, %98 : vector<16x128xf32>
    %100 = arith.addf %99, %21 : vector<16x128xf32>
    %101 = arith.truncf %99 : vector<16x128xf32> to vector<16x128xbf16>
    %c0_45 = arith.constant 0 : index
    %c0_46 = arith.constant 0 : index
    %102 = vector.load %arg6[%c0_45, %c0_46] : memref<128x128xbf16, #tpu.memory_space<vmem>>, vector<128x128xbf16>
    %cst_47 = arith.constant dense<0.000000e+00> : vector<16x128xf32>
    %103 = tpu.matmul %101, %102, %cst_47 {dimension_numbers = #tpu.dot_dimension_numbers<[1], [0], [0], [1], [0, 0, 1, 1], [], []>} : vector<16x128xbf16>, vector<128x128xbf16>, vector<16x128xf32> -> vector<16x128xf32>
    %104 = arith.subf %100, %103 : vector<16x128xf32>
    %cst_48 = arith.constant 0.0727107748 : f32
    %105 = vector.broadcast %cst_48 : f32 to vector<16x128xf32>
    %106 = arith.mulf %26, %105 : vector<16x128xf32>
    %cst_49 = arith.constant 0.000000e+00 : f32
    %107 = vector.broadcast %cst_49 : f32 to vector<16x128xf32>
    %108 = arith.subf %107, %106 : vector<16x128xf32>
    %109 = arith.maximumf %108, %104 : vector<16x128xf32>
    %110 = arith.minimumf %106, %109 : vector<16x128xf32>
    %111 = arith.subf %104, %110 : vector<16x128xf32>
    %112 = arith.addf %111, %21 : vector<16x128xf32>
    %113 = arith.truncf %111 : vector<16x128xf32> to vector<16x128xbf16>
    %c0_50 = arith.constant 0 : index
    %c0_51 = arith.constant 0 : index
    %114 = vector.load %arg6[%c0_50, %c0_51] : memref<128x128xbf16, #tpu.memory_space<vmem>>, vector<128x128xbf16>
    %cst_52 = arith.constant dense<0.000000e+00> : vector<16x128xf32>
    %115 = tpu.matmul %113, %114, %cst_52 {dimension_numbers = #tpu.dot_dimension_numbers<[1], [0], [0], [1], [0, 0, 1, 1], [], []>} : vector<16x128xbf16>, vector<128x128xbf16>, vector<16x128xf32> -> vector<16x128xf32>
    %116 = arith.subf %112, %115 : vector<16x128xf32>
    %cst_53 = arith.constant 5.000000e-02 : f32
    %117 = vector.broadcast %cst_53 : f32 to vector<16x128xf32>
    %118 = arith.mulf %26, %117 : vector<16x128xf32>
    %cst_54 = arith.constant 0.000000e+00 : f32
    %119 = vector.broadcast %cst_54 : f32 to vector<16x128xf32>
    %120 = arith.subf %119, %118 : vector<16x128xf32>
    %121 = arith.maximumf %120, %116 : vector<16x128xf32>
    %122 = arith.minimumf %118, %121 : vector<16x128xf32>
    %123 = arith.subf %116, %122 : vector<16x128xf32>
    %124 = vector.shape_cast %123 : vector<16x128xf32> to vector<1x16x128xf32>
    %c0_55 = arith.constant 0 : index
    %c0_56 = arith.constant 0 : index
    %c0_57 = arith.constant 0 : index
    %125 = vector.load %arg7[%c0_55, %c0_56, %c0_57] : memref<1x1x128xf32, #tpu.memory_space<vmem>>, vector<1x1x128xf32>
    %126 = vector.shape_cast %125 : vector<1x1x128xf32> to vector<1x128xf32>
    %cst_58 = arith.constant dense<0.000000e+00> : vector<1x128xf32>
    %127 = vector.multi_reduction <add>, %124, %cst_58 [1] : vector<1x16x128xf32> to vector<1x128xf32>
    %128 = arith.addf %126, %127 : vector<1x128xf32>
    %c0_59 = arith.constant 0 : index
    %c0_60 = arith.constant 0 : index
    %c0_61 = arith.constant 0 : index
    %129 = vector.load %arg7[%c0_59, %c0_60, %c0_61] : memref<1x1x128xf32, #tpu.memory_space<vmem>>, vector<1x1x128xf32>
    %130 = vector.shape_cast %129 : vector<1x1x128xf32> to vector<1x128xf32>
    %131 = vector.shape_cast %128 : vector<1x128xf32> to vector<1x1x128xf32>
    tpu.vector_store %arg7[%c0_59, %c0_60, %c0_61], %131 {strides = array<i32>} : memref<1x1x128xf32, #tpu.memory_space<vmem>>, vector<1x1x128xf32>,
    return
  }
  func.func @transform_0(%arg0: i32, %arg1: i32) -> (i32, i32, i32) {
    %c1_i32 = arith.constant 1 : i32
    %0 = arith.muli %arg0, %c1_i32 : i32
    %1 = arith.addi %0, %arg1 : i32
    %c0_i32 = arith.constant 0 : i32
    %c0_i32_0 = arith.constant 0 : i32
    %c0_i32_1 = arith.constant 0 : i32
    return %1, %c0_i32, %c0_i32_0 : i32, i32, i32
  }
  func.func @transform_1(%arg0: i32, %arg1: i32) -> (i32, i32) {
    %c0_i32 = arith.constant 0 : i32
    %c0_i32_0 = arith.constant 0 : i32
    %c0_i32_1 = arith.constant 0 : i32
    return %c0_i32, %c0_i32_0 : i32, i32
  }
  func.func @transform_2(%arg0: i32, %arg1: i32) -> (i32, i32) {
    %c0_i32 = arith.constant 0 : i32
    %c0_i32_0 = arith.constant 0 : i32
    %c0_i32_1 = arith.constant 0 : i32
    return %c0_i32, %c0_i32_0 : i32, i32
  }
  func.func @transform_3(%arg0: i32, %arg1: i32) -> (i32, i32) {
    %c0_i32 = arith.constant 0 : i32
    %c0_i32_0 = arith.constant 0 : i32
    %c0_i32_1 = arith.constant 0 : i32
    return %c0_i32, %c0_i32_0 : i32, i32
  }
  func.func @transform_4(%arg0: i32, %arg1: i32) -> (i32, i32) {
    %c0_i32 = arith.constant 0 : i32
    %c0_i32_0 = arith.constant 0 : i32
    %c0_i32_1 = arith.constant 0 : i32
    return %c0_i32, %c0_i32_0 : i32, i32
  }
  func.func @transform_5(%arg0: i32, %arg1: i32) -> (i32, i32, i32) {
    %c0_i32 = arith.constant 0 : i32
    %c0_i32_0 = arith.constant 0 : i32
    %c0_i32_1 = arith.constant 0 : i32
    return %arg0, %c0_i32, %c0_i32_0 : i32, i32, i32
  }
}

</mosaic_0001>

<llo_original>
// kernel: tpu_custom_call.1
$region0: #{tpu_custom_call.1}
  #allocation0 [shape = 'u32[]', space=smem, size = 0x4, offset = 0x4, fixed_abs, tag = 'smem constant byte address 0x4 - core index']
  #allocation1 [shape = 'u32[144,128]{1,0:T(1,128)}', space=vmem, size = 0x12000, scoped, tag = 'internal scratch']
  %s0 = inlined_call_operand.hbm [shape: bf16[2,16,64], index: 0, kind: input, shape index: {}]
  %s1 = inlined_call_operand.hbm [shape: bf16[64,128], index: 1, kind: input, shape index: {}]
  %s2 = inlined_call_operand.hbm [shape: bf16[128,128], index: 2, kind: input, shape index: {}]
  %s3 = inlined_call_operand.hbm [shape: bf16[128,128], index: 3, kind: input, shape index: {}]
  %s4 = inlined_call_operand.hbm [shape: bf16[128,128], index: 4, kind: input, shape index: {}]
  %s5 = inlined_call_operand.hbm [shape: f32[2,1,128], index: 5, kind: output, shape index: {}]
  %s6 = sld [smem:[#allocation0]]
  $region77: #{tpu_custom_call.1} parent=0
    _
  %s8 = ssub.s32 1, %s6
  %s9 = scalar_select 0, %s8, %s6
  $region1: #{tpu_custom_call.1} parent=0
    #allocation2 [shape = 'u8[8192]{0}', space=vmem, size = 0x2000, scoped, tag = 'input window, operand 0']
    #allocation3 [shape = 's32[2]{0}', space=sflag, size = 0x8, scoped, tag = 'scoped memory for tpu_custom_call.1']
    #allocation4 [shape = 's32[2]{0}', space=sflag, size = 0x8, scoped, tag = 'scoped memory for tpu_custom_call.1']
    #allocation5 [shape = 'u8[16384]{0}', space=vmem, size = 0x4000, scoped, tag = 'input window, operand 1, single buffered']
    #allocation6 [shape = 's32[1]{0}', space=sflag, size = 0x4, scoped, tag = 'scoped memory for tpu_custom_call.1']
    #allocation7 [shape = 'u8[32768]{0}', space=vmem, size = 0x8000, scoped, tag = 'input window, operand 2, single buffered']
    #allocation8 [shape = 'u8[32768]{0}', space=vmem, size = 0x8000, scoped, tag = 'input window, operand 3, single buffered']
    #allocation9 [shape = 's32[1]{0}', space=sflag, size = 0x4, scoped, tag = 'scoped memory for tpu_custom_call.1']
    #allocation10 [shape = 'u8[32768]{0}', space=vmem, size = 0x8000, scoped, tag = 'input window, operand 4, single buffered']
    #allocation11 [shape = 'u8[1024]{0}', space=vmem, size = 0x400, scoped, tag = 'output window, operand 0']
    %10 = vsyncpa [#allocation3], 0
    %s11 = scalar_lea.sflag [#allocation3], 1
    %12 = vsyncpa %s11, 0
    %13 = vsyncpa [#allocation6], 0
    %14 = vsyncpa [#allocation9], 0
    %15 = vsyncpa [#allocation4], 0
    %s16 = scalar_lea.sflag [#allocation4], 1
    %17 = vsyncpa %s16, 0
    loop: start=0, step=1, limit=4
    $region2: #{tpu_custom_call.1} parent=1 // loop_pre_header
      _
    $region3: #{tpu_custom_call.1} parent=1 // loop_header
      %s19 = sphi 0, %s23
      %p20 = scmp.ge.s32.totalorder %s19, 4
      %s26 = sphi 0, %s38
      %s27 = sphi 0, %s34
      %s28 = sphi 0, %s26
      %s29 = sphi 0, %s27
      %s30 = sphi 0, %s28
      %s31 = sphi 0, %s29
      %s43 = sphi 0, %s45
      %s46 = sphi 0, %s43
      %s47 = sphi 0, %s46
      %s63 = sphi 0, %s47
      %s67 = sphi 0, %s67
      %s69 = sphi 0, %s67
      %s70 = sphi 0, %s69
      %s84 = sphi 0, %s70
      %s88 = sphi 0, %s88
      %s90 = sphi 0, %s88
      %s91 = sphi 0, %s90
      %s105 = sphi 0, %s91
      %s109 = sphi 0, %s109
      %s111 = sphi 0, %s109
      %s112 = sphi 0, %s111
      %s126 = sphi 0, %s112
      %s130 = sphi 0, %s130
      %s132 = sphi 0, %s130
      %s133 = sphi 0, %s132
      %s147 = sphi 0, %s133
      %s153 = sphi 0, %s155
      %s156 = sphi 0, %s153
      %s157 = sphi 0, %s156
      %s173 = sphi 0, %s157
    $region4: #{tpu_custom_call.1} parent=1 // loop_header_branch
      %22 = sbr.rel (%p20) target = $region8
    $region5: #{tpu_custom_call.1} parent=1 // loop_body
      %s24 = ssub.s32 %s19, 1
      %s25 = ssub.s32 %s19, 2
      %s32 = sadd.s32 1, %s27
      %p33 = scmp.ge.s32.totalorder %s32, 1
      %s34 = scalar_select %p33, 0, %s32
      %s35 = sadd.s32 1, %s26
      %s36 = scalar_select %p33, %s35, %s26
      %p37 = scmp.ge.s32.totalorder %s36, 2
      %s38 = scalar_select %p37, 0, %s36
      %s39 = sadd.s32 %s26, %s27
      %s40 = sadd.s32 %s38, %s34
      %s41 = ssub.s32 %s39, %s40
      %p42 = scmp.eq.s32.totalorder %s41, 0
      %s44 = sadd.s32 %s43, 1
      %s45 = scalar_select %p42, %s43, %s44
      %p48 = pneg %p42
      %p49 = scmp.eq.s32.totalorder %s19, 1
      %p50 = por %p48, %p49
      %p51 = scmp.ne.s32.totalorder %s43, %s46
      %p52 = scmp.eq.s32.totalorder %s19, 0
      %p53 = por %p51, %p52
      %p54 = scmp.ne.s32.totalorder %s43, %s46
      %p55 = scmp.eq.s32.totalorder %s24, 1
      %p56 = por %p54, %p55
      %p57 = scmp.ne.s32.totalorder %s46, %s47
      %p58 = scmp.eq.s32.totalorder %s24, 0
      %p59 = por %p57, %p58
      %p60 = scmp.ne.s32.totalorder %s46, %s47
      %p61 = scmp.eq.s32.totalorder %s25, 1
      %p62 = por %p60, %p61
      %p64 = scmp.ne.s32.totalorder %s47, %s63
      %p65 = scmp.eq.s32.totalorder %s25, 0
      %p66 = por %p64, %p65
      %s68 = sadd.s32 %s67, 1
      %p71 = scmp.eq.s32.totalorder %s19, 1
      %p72 = scmp.ne.s32.totalorder %s67, %s69
      %p73 = scmp.eq.s32.totalorder %s19, 0
      %p74 = por %p72, %p73
      %p75 = scmp.ne.s32.totalorder %s67, %s69
      %p76 = scmp.eq.s32.totalorder %s24, 1
      %p77 = por %p75, %p76
      %p78 = scmp.ne.s32.totalorder %s69, %s70
      %p79 = scmp.eq.s32.totalorder %s24, 0
      %p80 = por %p78, %p79
      %p81 = scmp.ne.s32.totalorder %s69, %s70
      %p82 = scmp.eq.s32.totalorder %s25, 1
      %p83 = por %p81, %p82
      %p85 = scmp.ne.s32.totalorder %s70, %s84
      %p86 = scmp.eq.s32.totalorder %s25, 0
      %p87 = por %p85, %p86
      %s89 = sadd.s32 %s88, 1
      %p92 = scmp.eq.s32.totalorder %s19, 1
      %p93 = scmp.ne.s32.totalorder %s88, %s90
      %p94 = scmp.eq.s32.totalorder %s19, 0
      %p95 = por %p93, %p94
      %p96 = scmp.ne.s32.totalorder %s88, %s90
      %p97 = scmp.eq.s32.totalorder %s24, 1
      %p98 = por %p96, %p97
      %p99 = scmp.ne.s32.totalorder %s90, %s91
      %p100 = scmp.eq.s32.totalorder %s24, 0
      %p101 = por %p99, %p100
      %p102 = scmp.ne.s32.totalorder %s90, %s91
      %p103 = scmp.eq.s32.totalorder %s25, 1
      %p104 = por %p102, %p103
      %p106 = scmp.ne.s32.totalorder %s91, %s105
      %p107 = scmp.eq.s32.totalorder %s25, 0
      %p108 = por %p106, %p107
      %s110 = sadd.s32 %s109, 1
      %p113 = scmp.eq.s32.totalorder %s19, 1
      %p114 = scmp.ne.s32.totalorder %s109, %s111
      %p115 = scmp.eq.s32.totalorder %s19, 0
      %p116 = por %p114, %p115
      %p117 = scmp.ne.s32.totalorder %s109, %s111
      %p118 = scmp.eq.s32.totalorder %s24, 1
      %p119 = por %p117, %p118
      %p120 = scmp.ne.s32.totalorder %s111, %s112
      %p121 = scmp.eq.s32.totalorder %s24, 0
      %p122 = por %p120, %p121
      %p123 = scmp.ne.s32.totalorder %s111, %s112
      %p124 = scmp.eq.s32.totalorder %s25, 1
      %p125 = por %p123, %p124
      %p127 = scmp.ne.s32.totalorder %s112, %s126
      %p128 = scmp.eq.s32.totalorder %s25, 0
      %p129 = por %p127, %p128
      %s131 = sadd.s32 %s130, 1
      %p134 = scmp.eq.s32.totalorder %s19, 1
      %p135 = scmp.ne.s32.totalorder %s130, %s132
      %p136 = scmp.eq.s32.totalorder %s19, 0
      %p137 = por %p135, %p136
      %p138 = scmp.ne.s32.totalorder %s130, %s132
      %p139 = scmp.eq.s32.totalorder %s24, 1
      %p140 = por %p138, %p139
      %p141 = scmp.ne.s32.totalorder %s132, %s133
      %p142 = scmp.eq.s32.totalorder %s24, 0
      %p143 = por %p141, %p142
      %p144 = scmp.ne.s32.totalorder %s132, %s133
      %p145 = scmp.eq.s32.totalorder %s25, 1
      %p146 = por %p144, %p145
      %p148 = scmp.ne.s32.totalorder %s133, %s147
      %p149 = scmp.eq.s32.totalorder %s25, 0
      %p150 = por %p148, %p149
      %s151 = ssub.s32 %s26, %s38
      %p152 = scmp.eq.s32.totalorder %s151, 0
      %s154 = sadd.s32 %s153, 1
      %s155 = scalar_select %p152, %s153, %s154
      %p158 = pneg %p152
      %p159 = scmp.eq.s32.totalorder %s19, 1
      %p160 = por %p158, %p159
      %p161 = scmp.ne.s32.totalorder %s153, %s156
      %p162 = scmp.eq.s32.totalorder %s19, 0
      %p163 = por %p161, %p162
      %p164 = scmp.ne.s32.totalorder %s153, %s156
      %p165 = scmp.eq.s32.totalorder %s24, 1
      %p166 = por %p164, %p165
      %p167 = scmp.ne.s32.totalorder %s156, %s157
      %p168 = scmp.eq.s32.totalorder %s24, 0
      %p169 = por %p167, %p168
      %p170 = scmp.ne.s32.totalorder %s156, %s157
      %p171 = scmp.eq.s32.totalorder %s25, 1
      %p172 = por %p170, %p171
      %p174 = scmp.ne.s32.totalorder %s157, %s173
      %p175 = scmp.eq.s32.totalorder %s25, 0
      %p176 = por %p174, %p175
      %p177 = scmp.le.s32.totalorder 1, %s19
      %p178 = scmp.lt.s32.totalorder %s19, 3
      %p179 = pnand %p177, %p178
      %p180 = pneg %p179
      // Predicated region
      $region9: #{tpu_custom_call.1} parent=5 // pred_check
        _
      $region10: #{tpu_custom_call.1} parent=5 // pred_check_branch
        %182 = sbr.rel (%p179) target = $region12
      $region11: #{tpu_custom_call.1} parent=5 // pred_region
        %s183 = ssub.s32 %s19, 1
        // Predicated region
        $region13: #{tpu_custom_call.1} parent=11 // pred_check
          %p184 = pneg %p80
        $region14: #{tpu_custom_call.1} parent=11 // pred_check_branch
          %186 = sbr.rel (%p184) target = $region16
        $region15: #{tpu_custom_call.1} parent=11 // pred_region
          %s188 = ssub.s32 512, 512
          %189 = vsyncadd [#allocation6], %s188
          %s190 = sshll.u32 [#allocation5], 4
          %s191 = int_to_ptr.vmem [resolvable:$true] %s190
          %196 = dma.hbm_to_vmem [thread:$0]  %s1, 512, %s191, [#allocation6], 64, 64, 4
        $region16: #{tpu_custom_call.1} parent=11 // pred_fallthru
          _
        // Predicated region
        $region17: #{tpu_custom_call.1} parent=11 // pred_check
          %p197 = pneg %p101
        $region18: #{tpu_custom_call.1} parent=11 // pred_check_branch
          %199 = sbr.rel (%p197) target = $region20
        $region19: #{tpu_custom_call.1} parent=11 // pred_region
          %s201 = ssub.s32 1024, 1024
          %202 = vsyncadd [#allocation6], %s201
          %s203 = sshll.u32 [#allocation7], 4
          %s204 = int_to_ptr.vmem [resolvable:$true] %s203
          %209 = dma.hbm_to_vmem [thread:$0]  %s2, 1024, %s204, [#allocation6], 64, 64, 4
        $region20: #{tpu_custom_call.1} parent=11 // pred_fallthru
          _
        // Predicated region
        $region21: #{tpu_custom_call.1} parent=11 // pred_check
          %p210 = pneg %p122
        $region22: #{tpu_custom_call.1} parent=11 // pred_check_branch
          %212 = sbr.rel (%p210) target = $region24
        $region23: #{tpu_custom_call.1} parent=11 // pred_region
          %s214 = ssub.s32 1024, 1024
          %215 = vsyncadd [#allocation9], %s214
          %s216 = sshll.u32 [#allocation8], 4
          %s217 = int_to_ptr.vmem [resolvable:$true] %s216
          %222 = dma.hbm_to_vmem [thread:$0]  %s3, 1024, %s217, [#allocation9], 64, 64, 4
        $region24: #{tpu_custom_call.1} parent=11 // pred_fallthru
          _
        // Predicated region
        $region25: #{tpu_custom_call.1} parent=11 // pred_check
          %p223 = pneg %p143
        $region26: #{tpu_custom_call.1} parent=11 // pred_check_branch
          %225 = sbr.rel (%p223) target = $region28
        $region27: #{tpu_custom_call.1} parent=11 // pred_region
          %s227 = ssub.s32 1024, 1024
          %228 = vsyncadd [#allocation9], %s227
          %s229 = sshll.u32 [#allocation10], 4
          %s230 = int_to_ptr.vmem [resolvable:$true] %s229
          %235 = dma.hbm_to_vmem [thread:$0]  %s4, 1024, %s230, [#allocation9], 64, 64, 4
        $region28: #{tpu_custom_call.1} parent=11 // pred_fallthru
          _
      $region12: #{tpu_custom_call.1} parent=5 // pred_fallthru
        _
      %p236 = scmp.lt.s32.totalorder %s19, 2
      // Predicated region
      $region29: #{tpu_custom_call.1} parent=5 // pred_check
        %p237 = pneg %p236
      $region30: #{tpu_custom_call.1} parent=5 // pred_check_branch
        %239 = sbr.rel (%p237) target = $region32
      $region31: #{tpu_custom_call.1} parent=5 // pred_region
        // Predicated region
        $region33: #{tpu_custom_call.1} parent=31 // pred_check
          %p240 = pneg %p53
        $region34: #{tpu_custom_call.1} parent=31 // pred_check_branch
          %242 = sbr.rel (%p240) target = $region36
        $region35: #{tpu_custom_call.1} parent=31 // pred_region
          %s243 = sand.u32 %s43, 1
          %s244 = scalar_lea.sflag [#allocation3], %s243
          %s245 = sand.u32 %s43, 1
          %s246 = smul.addr %s245, 8
          %s247 = scalar_lea.vmem [#allocation2], %s246
          %s248 = sadd.s32 %s26, %s27
          %s250 = ssub.s32 128, 128
          %251 = vsyncadd %s244, %s250
          %s252 = smul.addr %s248, 2
          %s253 = smul.addr %s252, 64
          %s254 = scalar_lea.hbm %s0, %s253
          %s255 = sshll.u32 %s247, 4
          %s256 = int_to_ptr.vmem [resolvable:$true] %s255
          %261 = dma.hbm_to_vmem [thread:$0]  %s254, 128, %s256, %s244, 64, 64, 4
        $region36: #{tpu_custom_call.1} parent=31 // pred_fallthru
          _
      $region32: #{tpu_custom_call.1} parent=5 // pred_fallthru
        _
      %p262 = scmp.le.s32.totalorder 1, %s19
      %p263 = scmp.lt.s32.totalorder %s19, 3
      %p264 = pnand %p262, %p263
      %p265 = pneg %p264
      // Predicated region
      $region37: #{tpu_custom_call.1} parent=5 // pred_check
        _
      $region38: #{tpu_custom_call.1} parent=5 // pred_check_branch
        %267 = sbr.rel (%p264) target = $region40
      $region39: #{tpu_custom_call.1} parent=5 // pred_region
        %s268 = ssub.s32 %s19, 1
        %s269 = sand.u32 %s46, 1
        %s270 = scalar_lea.sflag [#allocation3], %s269
        %s271 = sand.u32 %s46, 1
        %s272 = smul.addr %s271, 8
        %s273 = scalar_lea.vmem [#allocation2], %s272
        // Predicated region
        $region41: #{tpu_custom_call.1} parent=39 // pred_check
          %p274 = pneg %p59
        $region42: #{tpu_custom_call.1} parent=39 // pred_check_branch
          %276 = sbr.rel (%p274) target = $region44
        $region43: #{tpu_custom_call.1} parent=39 // pred_region
          %277 = dma.done %s270, 128
        $region44: #{tpu_custom_call.1} parent=39 // pred_fallthru
          _
        // Predicated region
        $region45: #{tpu_custom_call.1} parent=39 // pred_check
          %p278 = pneg %p80
        $region46: #{tpu_custom_call.1} parent=39 // pred_check_branch
          %280 = sbr.rel (%p278) target = $region48
        $region47: #{tpu_custom_call.1} parent=39 // pred_region
          %281 = dma.done [#allocation6], 512
        $region48: #{tpu_custom_call.1} parent=39 // pred_fallthru
          _
        // Predicated region
        $region49: #{tpu_custom_call.1} parent=39 // pred_check
          %p282 = pneg %p101
        $region50: #{tpu_custom_call.1} parent=39 // pred_check_branch
          %284 = sbr.rel (%p282) target = $region52
        $region51: #{tpu_custom_call.1} parent=39 // pred_region
          %285 = dma.done [#allocation6], 1024
        $region52: #{tpu_custom_call.1} parent=39 // pred_fallthru
          _
        // Predicated region
        $region53: #{tpu_custom_call.1} parent=39 // pred_check
          %p286 = pneg %p122
        $region54: #{tpu_custom_call.1} parent=39 // pred_check_branch
          %288 = sbr.rel (%p286) target = $region56
        $region55: #{tpu_custom_call.1} parent=39 // pred_region
          %289 = dma.done [#allocation9], 1024
        $region56: #{tpu_custom_call.1} parent=39 // pred_fallthru
          _
        // Predicated region
        $region57: #{tpu_custom_call.1} parent=39 // pred_check
          %p290 = pneg %p143
        $region58: #{tpu_custom_call.1} parent=39 // pred_check_branch
          %292 = sbr.rel (%p290) target = $region60
        $region59: #{tpu_custom_call.1} parent=39 // pred_region
          %293 = dma.done [#allocation9], 1024
        $region60: #{tpu_custom_call.1} parent=39 // pred_fallthru
          _
        %s294 = sand.u32 %s46, 1
        %s295 = scalar_lea.sflag [#allocation3], %s294
        %s296 = sand.u32 %s46, 1
        %s297 = smul.addr %s296, 8
        %s298 = scalar_lea.vmem [#allocation2], %s297
        %p299 = pneg %p59
        %p300 = pneg %p56
        %p301 = pneg %p80
        %p302 = pneg %p77
        %p303 = pneg %p101
        %p304 = pneg %p98
        %p305 = pneg %p122
        %p306 = pneg %p119
        %p307 = pneg %p143
        %p308 = pneg %p140
        %p309 = pneg %p169
        %p310 = pneg %p166
        %s311 = sand.u32 %s156, 1
        %s312 = scalar_lea.sflag [#allocation4], %s311
        %s313 = sand.u32 %s156, 1
        %s314 = scalar_lea.vmem [#allocation11], %s313
        %s315 = sadd.s32 %s28, %s29
        %p317 = scmp.eq.s32.totalorder %s29, 0
        // Predicated region
        $region61: #{tpu_custom_call.1} parent=39 // pred_check
          %p318 = pneg %p317
        $region62: #{tpu_custom_call.1} parent=39 // pred_check_branch
          %320 = sbr.rel (%p318) target = $region64
        $region63: #{tpu_custom_call.1} parent=39 // pred_region
          %321 = vst [vmem:[%s314] sm:$0x1] 0.0
        $region64: #{tpu_custom_call.1} parent=39 // pred_fallthru
          _
        %v322 = vld [vmem:[%s273] sm:$0xf]
        %v323 = vld [vmem:[%s273 + $0x4] sm:$0xf]
        %v324 = vld [vmem:[#allocation5] sm:$0xf]
        %v325 = vld [vmem:[#allocation5 + $0x4] sm:$0xf]
        %v326 = vld [vmem:[#allocation5 + $0x8] sm:$0xf]
        %v327 = vld [vmem:[#allocation5 + $0xc] sm:$0xf]
        %v328 = vld [vmem:[#allocation5 + $0x10] sm:$0xf]
        %v329 = vld [vmem:[#allocation5 + $0x14] sm:$0xf]
        %v330 = vld [vmem:[#allocation5 + $0x18] sm:$0xf]
        %v331 = vld [vmem:[#allocation5 + $0x1c] sm:$0xf]
        %v334 = vunpack.c.l.b16 %v322
        %v335 = vunpack.c.l.b16 %v323
        %v336 = vpack.c.b16 %v335, %v334
        %v345 = vunpack.c.l.b16 %v324
        %v346 = vunpack.c.l.b16 %v325
        %v347 = vunpack.c.l.b16 %v326
        %v348 = vunpack.c.l.b16 %v327
        %v349 = vunpack.c.l.b16 %v328
        %v350 = vunpack.c.l.b16 %v329
        %v351 = vunpack.c.l.b16 %v330
        %v352 = vunpack.c.l.b16 %v331
        %v353 = vpack.c.b16 %v346, %v345
        %v354 = vpack.c.b16 %v348, %v347
        %v355 = vpack.c.b16 %v350, %v349
        %v356 = vpack.c.b16 %v352, %v351
        %vm361 = vcmask 523264
        %v363 = vsel %vm361, %v336, 0
        %365 = vmatprep.subr.bf16.mxu0 0
        %366 = vmatpush1.bf16.msra.mxu0 %v353
        %367 = vmatprep.subr.bf16.mxu0 0
        %368 = vmatpush1.bf16.msra.mxu0 %v354
        %369 = vmatprep.subr.bf16.mxu0 0
        %370 = vmatpush1.bf16.msra.mxu0 %v355
        %371 = vmatprep.subr.bf16.mxu0 0
        %372 = vmatpush1.bf16.msra.mxu0 %v356
        %373 = vmatprep.subr.bf16.mxu0 0
        %374 = vmatpush1.bf16.msra.mxu0 0
        %375 = vmatprep.subr.bf16.mxu0 0
        %376 = vmatpush1.bf16.msra.mxu0 0
        %377 = vmatprep.subr.bf16.mxu0 0
        %378 = vmatpush1.bf16.msra.mxu0 0
        %379 = vmatprep.subr.bf16.mxu0 0
        %380 = vmatpush1.bf16.msra.mxu0 0
        %381 = vmatprep.subr.bf16.mxu0 0
        %382 = vmatpush1.bf16.msra.mxu0 0
        %383 = vmatprep.subr.bf16.mxu0 0
        %384 = vmatpush1.bf16.msra.mxu0 0
        %385 = vmatprep.subr.bf16.mxu0 0
        %386 = vmatpush1.bf16.msra.mxu0 0
        %387 = vmatprep.subr.bf16.mxu0 0
        %388 = vmatpush1.bf16.msra.mxu0 0
        %389 = vmatprep.subr.bf16.mxu0 0
        %390 = vmatpush1.bf16.msra.mxu0 0
        %391 = vmatprep.subr.bf16.mxu0 0
        %392 = vmatpush1.bf16.msra.mxu0 0
        %393 = vmatprep.subr.bf16.mxu0 0
        %394 = vmatpush1.bf16.msra.mxu0 0
        %395 = vmatprep.subr.bf16.mxu0 0
        %396 = vmatpush1.bf16.msra.mxu0 0
        %397 = vmatprep.mubr.bf16.mxu0 0
        %398 = vmatmul.mubr.bf16.gmra.mrb[0].mxu0 %v363
        %v399 = vpop.f32.mrb[0].mxu0
        %v400 = vadd.f32 0.0, %v399
        %v401 = vpop.f32.mrb[0].mxu0
        %v402 = vpop.f32.mrb[0].mxu0
        %v403 = vadd.f32 0.0, %v402
        %v404 = vpop.f32.mrb[0].mxu0
        %405 = vdwg.mxu0
        %v406 = vand.u32 2147483647, %v400
        %v407 = vand.u32 2147483647, %v403
        %v408 = vpack.c.bf16 %v407, %v406
        %v409 = vld [vmem:[#allocation7] sm:$0xf]
        %v410 = vld [vmem:[#allocation7 + $0x4] sm:$0xf]
        %v411 = vld [vmem:[#allocation7 + $0x8] sm:$0xf]
        %v412 = vld [vmem:[#allocation7 + $0xc] sm:$0xf]
        %v413 = vld [vmem:[#allocation7 + $0x10] sm:$0xf]
        %v414 = vld [vmem:[#allocation7 + $0x14] sm:$0xf]
        %v415 = vld [vmem:[#allocation7 + $0x18] sm:$0xf]
        %v416 = vld [vmem:[#allocation7 + $0x1c] sm:$0xf]
        %v417 = vld [vmem:[#allocation7 + $0x20] sm:$0xf]
        %v418 = vld [vmem:[#allocation7 + $0x24] sm:$0xf]
        %v419 = vld [vmem:[#allocation7 + $0x28] sm:$0xf]
        %v420 = vld [vmem:[#allocation7 + $0x2c] sm:$0xf]
        %v421 = vld [vmem:[#allocation7 + $0x30] sm:$0xf]
        %v422 = vld [vmem:[#allocation7 + $0x34] sm:$0xf]
        %v423 = vld [vmem:[#allocation7 + $0x38] sm:$0xf]
        %v424 = vld [vmem:[#allocation7 + $0x3c] sm:$0xf]
        %v441 = vunpack.c.l.b16 %v409
        %v442 = vunpack.c.l.b16 %v410
        %v443 = vunpack.c.l.b16 %v411
        %v444 = vunpack.c.l.b16 %v412
        %v445 = vunpack.c.l.b16 %v413
        %v446 = vunpack.c.l.b16 %v414
        %v447 = vunpack.c.l.b16 %v415
        %v448 = vunpack.c.l.b16 %v416
        %v449 = vunpack.c.l.b16 %v417
        %v450 = vunpack.c.l.b16 %v418
        %v451 = vunpack.c.l.b16 %v419
        %v452 = vunpack.c.l.b16 %v420
        %v453 = vunpack.c.l.b16 %v421
        %v454 = vunpack.c.l.b16 %v422
        %v455 = vunpack.c.l.b16 %v423
        %v456 = vunpack.c.l.b16 %v424
        %v457 = vpack.c.b16 %v442, %v441
        %v458 = vpack.c.b16 %v444, %v443
        %v459 = vpack.c.b16 %v446, %v445
        %v460 = vpack.c.b16 %v448, %v447
        %v461 = vpack.c.b16 %v450, %v449
        %v462 = vpack.c.b16 %v452, %v451
        %v463 = vpack.c.b16 %v454, %v453
        %v464 = vpack.c.b16 %v456, %v455
        %473 = vmatprep.subr.bf16.mxu0 0
        %474 = vmatpush1.bf16.msra.mxu0 %v457
        %475 = vmatprep.subr.bf16.mxu0 0
        %476 = vmatpush1.bf16.msra.mxu0 %v458
        %477 = vmatprep.subr.bf16.mxu0 0
        %478 = vmatpush1.bf16.msra.mxu0 %v459
        %479 = vmatprep.subr.bf16.mxu0 0
        %480 = vmatpush1.bf16.msra.mxu0 %v460
        %481 = vmatprep.subr.bf16.mxu0 0
        %482 = vmatpush1.bf16.msra.mxu0 %v461
        %483 = vmatprep.subr.bf16.mxu0 0
        %484 = vmatpush1.bf16.msra.mxu0 %v462
        %485 = vmatprep.subr.bf16.mxu0 0
        %486 = vmatpush1.bf16.msra.mxu0 %v463
        %487 = vmatprep.subr.bf16.mxu0 0
        %488 = vmatpush1.bf16.msra.mxu0 %v464
        %489 = vmatprep.subr.bf16.mxu0 0
        %490 = vmatpush1.bf16.msra.mxu0 0
        %491 = vmatprep.subr.bf16.mxu0 0
        %492 = vmatpush1.bf16.msra.mxu0 0
        %493 = vmatprep.subr.bf16.mxu0 0
        %494 = vmatpush1.bf16.msra.mxu0 0
        %495 = vmatprep.subr.bf16.mxu0 0
        %496 = vmatpush1.bf16.msra.mxu0 0
        %497 = vmatprep.subr.bf16.mxu0 0
        %498 = vmatpush1.bf16.msra.mxu0 0
        %499 = vmatprep.subr.bf16.mxu0 0
        %500 = vmatpush1.bf16.msra.mxu0 0
        %501 = vmatprep.subr.bf16.mxu0 0
        %502 = vmatpush1.bf16.msra.mxu0 0
        %503 = vmatprep.subr.bf16.mxu0 0
        %504 = vmatpush1.bf16.msra.mxu0 0
        %505 = vmatprep.mubr.bf16.mxu0 0
        %506 = vmatmul.mubr.bf16.gmra.mrb[0].mxu0 %v408
        %v507 = vpop.f32.mrb[0].mxu0
        %v508 = vadd.f32 0.0, %v507
        %v509 = vpop.f32.mrb[0].mxu0
        %v510 = vpop.f32.mrb[0].mxu0
        %v511 = vadd.f32 0.0, %v510
        %v512 = vpop.f32.mrb[0].mxu0
        %513 = vdwg.mxu0
        %v514 = vmul.f32 %v508, %v508
        %v515 = vmul.f32 %v511, %v511
        %516 = vadd.xlane.f32.xlu0 %v514
        %v517 = vpop.xlane.xlu0 %516
        %518 = vadd.xlane.f32.xlu0 %v515
        %v519 = vpop.xlane.xlu0 %518
        %v520 = vadd.f32 %v517, 1e-06
        %v521 = vadd.f32 %v519, 1e-06
        %v522 = vrsqrt.pop %v520
        %v523 = vrsqrt.pop %v521
        %v524 = vmul.f32 %v508, %v522
        %v525 = vmul.f32 %v511, %v523
        %v526 = vpack.c.bf16 %v525, %v524
        %v527 = vld [vmem:[#allocation8] sm:$0xf]
        %v528 = vld [vmem:[#allocation8 + $0x4] sm:$0xf]
        %v529 = vld [vmem:[#allocation8 + $0x8] sm:$0xf]
        %v530 = vld [vmem:[#allocation8 + $0xc] sm:$0xf]
        %v531 = vld [vmem:[#allocation8 + $0x10] sm:$0xf]
        %v532 = vld [vmem:[#allocation8 + $0x14] sm:$0xf]
        %v533 = vld [vmem:[#allocation8 + $0x18] sm:$0xf]
        %v534 = vld [vmem:[#allocation8 + $0x1c] sm:$0xf]
        %v535 = vld [vmem:[#allocation8 + $0x20] sm:$0xf]
        %v536 = vld [vmem:[#allocation8 + $0x24] sm:$0xf]
        %v537 = vld [vmem:[#allocation8 + $0x28] sm:$0xf]
        %v538 = vld [vmem:[#allocation8 + $0x2c] sm:$0xf]
        %v539 = vld [vmem:[#allocation8 + $0x30] sm:$0xf]
        %v540 = vld [vmem:[#allocation8 + $0x34] sm:$0xf]
        %v541 = vld [vmem:[#allocation8 + $0x38] sm:$0xf]
        %v542 = vld [vmem:[#allocation8 + $0x3c] sm:$0xf]
        %v559 = vunpack.c.l.b16 %v527
        %v560 = vunpack.c.l.b16 %v528
        %v561 = vunpack.c.l.b16 %v529
        %v562 = vunpack.c.l.b16 %v530
        %v563 = vunpack.c.l.b16 %v531
        %v564 = vunpack.c.l.b16 %v532
        %v565 = vunpack.c.l.b16 %v533
        %v566 = vunpack.c.l.b16 %v534
        %v567 = vunpack.c.l.b16 %v535
        %v568 = vunpack.c.l.b16 %v536
        %v569 = vunpack.c.l.b16 %v537
        %v570 = vunpack.c.l.b16 %v538
        %v571 = vunpack.c.l.b16 %v539
        %v572 = vunpack.c.l.b16 %v540
        %v573 = vunpack.c.l.b16 %v541
        %v574 = vunpack.c.l.b16 %v542
        %v575 = vpack.c.b16 %v560, %v559
        %v576 = vpack.c.b16 %v562, %v561
        %v577 = vpack.c.b16 %v564, %v563
        %v578 = vpack.c.b16 %v566, %v565
        %v579 = vpack.c.b16 %v568, %v567
        %v580 = vpack.c.b16 %v570, %v569
        %v581 = vpack.c.b16 %v572, %v571
        %v582 = vpack.c.b16 %v574, %v573
        %591 = vmatprep.subr.bf16.mxu0 0
        %592 = vmatpush1.bf16.msra.mxu0 %v575
        %593 = vmatprep.subr.bf16.mxu0 0
        %594 = vmatpush1.bf16.msra.mxu0 %v576
        %595 = vmatprep.subr.bf16.mxu0 0
        %596 = vmatpush1.bf16.msra.mxu0 %v577
        %597 = vmatprep.subr.bf16.mxu0 0
        %598 = vmatpush1.bf16.msra.mxu0 %v578
        %599 = vmatprep.subr.bf16.mxu0 0
        %600 = vmatpush1.bf16.msra.mxu0 %v579
        %601 = vmatprep.subr.bf16.mxu0 0
        %602 = vmatpush1.bf16.msra.mxu0 %v580
        %603 = vmatprep.subr.bf16.mxu0 0
        %604 = vmatpush1.bf16.msra.mxu0 %v581
        %605 = vmatprep.subr.bf16.mxu0 0
        %606 = vmatpush1.bf16.msra.mxu0 %v582
        %607 = vmatprep.subr.bf16.mxu0 0
        %608 = vmatpush1.bf16.msra.mxu0 0
        %609 = vmatprep.subr.bf16.mxu0 0
        %610 = vmatpush1.bf16.msra.mxu0 0
        %611 = vmatprep.subr.bf16.mxu0 0
        %612 = vmatpush1.bf16.msra.mxu0 0
        %613 = vmatprep.subr.bf16.mxu0 0
        %614 = vmatpush1.bf16.msra.mxu0 0
        %615 = vmatprep.subr.bf16.mxu0 0
        %616 = vmatpush1.bf16.msra.mxu0 0
        %617 = vmatprep.subr.bf16.mxu0 0
        %618 = vmatpush1.bf16.msra.mxu0 0
        %619 = vmatprep.subr.bf16.mxu0 0
        %620 = vmatpush1.bf16.msra.mxu0 0
        %621 = vmatprep.subr.bf16.mxu0 0
        %622 = vmatpush1.bf16.msra.mxu0 0
        %623 = vmatprep.mubr.bf16.mxu0 0
        %624 = vmatmul.mubr.bf16.gmra.mrb[0].mxu0 %v526
        %v625 = vpop.f32.mrb[0].mxu0
        %v626 = vadd.f32 0.0, %v625
        %v627 = vpop.f32.mrb[0].mxu0
        %v628 = vpop.f32.mrb[0].mxu0
        %v629 = vadd.f32 0.0, %v628
        %v630 = vpop.f32.mrb[0].mxu0
        %631 = vdwg.mxu0
        %v632 = vand.u32 2147483647, %v626
        %v633 = vand.u32 2147483647, %v629
        %634 = vmax.xlane.f32.xlu0 %v632
        %v635 = vpop.xlane.xlu0 %634
        %636 = vmax.xlane.f32.xlu0 %v633
        %v637 = vpop.xlane.xlu0 %636
        %v638 = vadd.f32 %v626, 0.0
        %v639 = vadd.f32 %v629, 0.0
        %v640 = vld [vmem:[#allocation10] sm:$0xf]
        %v641 = vld [vmem:[#allocation10 + $0x4] sm:$0xf]
        %v642 = vld [vmem:[#allocation10 + $0x8] sm:$0xf]
        %v643 = vld [vmem:[#allocation10 + $0xc] sm:$0xf]
        %v644 = vld [vmem:[#allocation10 + $0x10] sm:$0xf]
        %v645 = vld [vmem:[#allocation10 + $0x14] sm:$0xf]
        %v646 = vld [vmem:[#allocation10 + $0x18] sm:$0xf]
        %v647 = vld [vmem:[#allocation10 + $0x1c] sm:$0xf]
        %v648 = vld [vmem:[#allocation10 + $0x20] sm:$0xf]
        %v649 = vld [vmem:[#allocation10 + $0x24] sm:$0xf]
        %v650 = vld [vmem:[#allocation10 + $0x28] sm:$0xf]
        %v651 = vld [vmem:[#allocation10 + $0x2c] sm:$0xf]
        %v652 = vld [vmem:[#allocation10 + $0x30] sm:$0xf]
        %v653 = vld [vmem:[#allocation10 + $0x34] sm:$0xf]
        %v654 = vld [vmem:[#allocation10 + $0x38] sm:$0xf]
        %v655 = vld [vmem:[#allocation10 + $0x3c] sm:$0xf]
        %v672 = vunpack.c.l.b16 %v640
        %v673 = vunpack.c.l.b16 %v641
        %v674 = vunpack.c.l.b16 %v642
        %v675 = vunpack.c.l.b16 %v643
        %v676 = vunpack.c.l.b16 %v644
        %v677 = vunpack.c.l.b16 %v645
        %v678 = vunpack.c.l.b16 %v646
        %v679 = vunpack.c.l.b16 %v647
        %v680 = vunpack.c.l.b16 %v648
        %v681 = vunpack.c.l.b16 %v649
        %v682 = vunpack.c.l.b16 %v650
        %v683 = vunpack.c.l.b16 %v651
        %v684 = vunpack.c.l.b16 %v652
        %v685 = vunpack.c.l.b16 %v653
        %v686 = vunpack.c.l.b16 %v654
        %v687 = vunpack.c.l.b16 %v655
        %v688 = vpack.c.b16 %v673, %v672
        %v689 = vpack.c.b16 %v675, %v674
        %v690 = vpack.c.b16 %v677, %v676
        %v691 = vpack.c.b16 %v679, %v678
        %v692 = vpack.c.b16 %v681, %v680
        %v693 = vpack.c.b16 %v683, %v682
        %v694 = vpack.c.b16 %v685, %v684
        %v695 = vpack.c.b16 %v687, %v686
        %704 = vmatprep.subr.bf16.mxu0 0
        %705 = vmatpush1.bf16.msra.mxu0 %v688
        %706 = vmatprep.subr.bf16.mxu0 0
        %707 = vmatpush1.bf16.msra.mxu0 %v689
        %708 = vmatprep.subr.bf16.mxu0 0
        %709 = vmatpush1.bf16.msra.mxu0 %v690
        %710 = vmatprep.subr.bf16.mxu0 0
        %711 = vmatpush1.bf16.msra.mxu0 %v691
        %712 = vmatprep.subr.bf16.mxu0 0
        %713 = vmatpush1.bf16.msra.mxu0 %v692
        %714 = vmatprep.subr.bf16.mxu0 0
        %715 = vmatpush1.bf16.msra.mxu0 %v693
        %716 = vmatprep.subr.bf16.mxu0 0
        %717 = vmatpush1.bf16.msra.mxu0 %v694
        %718 = vmatprep.subr.bf16.mxu0 0
        %719 = vmatpush1.bf16.msra.mxu0 %v695
        %720 = vmatprep.subr.bf16.mxu0 0
        %721 = vmatpush1.bf16.msra.mxu0 0
        %722 = vmatprep.subr.bf16.mxu0 0
        %723 = vmatpush1.bf16.msra.mxu0 0
        %724 = vmatprep.subr.bf16.mxu0 0
        %725 = vmatpush1.bf16.msra.mxu0 0
        %726 = vmatprep.subr.bf16.mxu0 0
        %727 = vmatpush1.bf16.msra.mxu0 0
        %728 = vmatprep.subr.bf16.mxu0 0
        %729 = vmatpush1.bf16.msra.mxu0 0
        %730 = vmatprep.subr.bf16.mxu0 0
        %731 = vmatpush1.bf16.msra.mxu0 0
        %732 = vmatprep.subr.bf16.mxu0 0
        %733 = vmatpush1.bf16.msra.mxu0 0
        %734 = vmatprep.subr.bf16.mxu0 0
        %735 = vmatpush1.bf16.msra.mxu0 0
        %736 = vmatprep.mubr.bf16.mxu0 0
        %737 = vmatmul.mubr.bf16.gmra.mrb[0].mxu0 0
        %v738 = vpop.f32.mrb[0].mxu0
        %v739 = vadd.f32 0.0, %v738
        %v740 = vpop.f32.mrb[0].mxu0
        %v741 = vpop.f32.mrb[0].mxu0
        %v742 = vadd.f32 0.0, %v741
        %v743 = vpop.f32.mrb[0].mxu0
        %744 = vdwg.mxu0
        %v745 = vsub.f32 %v638, %v739
        %v746 = vsub.f32 %v639, %v742
        %v747 = vmul.f32 %v635, 0.68765604
        %v748 = vmul.f32 %v637, 0.68765604
        %v749 = vsub.f32 0.0, %v747
        %v750 = vsub.f32 0.0, %v748
        %v751 = vmax.f32 %v749, %v745
        %v752 = vmax.f32 %v750, %v746
        %v753 = vmin.f32 %v747, %v751
        %v754 = vmin.f32 %v748, %v752
        %v755 = vsub.f32 %v745, %v753
        %v756 = vsub.f32 %v746, %v754
        %v757 = vadd.f32 %v755, %v626
        %v758 = vadd.f32 %v756, %v629
        %v759 = vpack.c.bf16 %v756, %v755
        %760 = vmatprep.subr.bf16.mxu0 0
        %761 = vmatpush1.bf16.msra.mxu0 %v688
        %762 = vmatprep.subr.bf16.mxu0 0
        %763 = vmatpush1.bf16.msra.mxu0 %v689
        %764 = vmatprep.subr.bf16.mxu0 0
        %765 = vmatpush1.bf16.msra.mxu0 %v690
        %766 = vmatprep.subr.bf16.mxu0 0
        %767 = vmatpush1.bf16.msra.mxu0 %v691
        %768 = vmatprep.subr.bf16.mxu0 0
        %769 = vmatpush1.bf16.msra.mxu0 %v692
        %770 = vmatprep.subr.bf16.mxu0 0
        %771 = vmatpush1.bf16.msra.mxu0 %v693
        %772 = vmatprep.subr.bf16.mxu0 0
        %773 = vmatpush1.bf16.msra.mxu0 %v694
        %774 = vmatprep.subr.bf16.mxu0 0
        %775 = vmatpush1.bf16.msra.mxu0 %v695
        %776 = vmatprep.subr.bf16.mxu0 0
        %777 = vmatpush1.bf16.msra.mxu0 0
        %778 = vmatprep.subr.bf16.mxu0 0
        %779 = vmatpush1.bf16.msra.mxu0 0
        %780 = vmatprep.subr.bf16.mxu0 0
        %781 = vmatpush1.bf16.msra.mxu0 0
        %782 = vmatprep.subr.bf16.mxu0 0
        %783 = vmatpush1.bf16.msra.mxu0 0
        %784 = vmatprep.subr.bf16.mxu0 0
        %785 = vmatpush1.bf16.msra.mxu0 0
        %786 = vmatprep.subr.bf16.mxu0 0
        %787 = vmatpush1.bf16.msra.mxu0 0
        %788 = vmatprep.subr.bf16.mxu0 0
        %789 = vmatpush1.bf16.msra.mxu0 0
        %790 = vmatprep.subr.bf16.mxu0 0
        %791 = vmatpush1.bf16.msra.mxu0 0
        %792 = vmatprep.mubr.bf16.mxu0 0
        %793 = vmatmul.mubr.bf16.gmra.mrb[0].mxu0 %v759
        %v794 = vpop.f32.mrb[0].mxu0
        %v795 = vadd.f32 0.0, %v794
        %v796 = vpop.f32.mrb[0].mxu0
        %v797 = vpop.f32.mrb[0].mxu0
        %v798 = vadd.f32 0.0, %v797
        %v799 = vpop.f32.mrb[0].mxu0
        %800 = vdwg.mxu0
        %v801 = vsub.f32 %v757, %v795
        %v802 = vsub.f32 %v758, %v798
        %v803 = vmul.f32 %v635, 0.4728708
        %v804 = vmul.f32 %v637, 0.4728708
        %v805 = vsub.f32 0.0, %v803
        %v806 = vsub.f32 0.0, %v804
        %v807 = vmax.f32 %v805, %v801
        %v808 = vmax.f32 %v806, %v802
        %v809 = vmin.f32 %v803, %v807
        %v810 = vmin.f32 %v804, %v808
        %v811 = vsub.f32 %v801, %v809
        %v812 = vsub.f32 %v802, %v810
        %v813 = vadd.f32 %v811, %v626
        %v814 = vadd.f32 %v812, %v629
        %v815 = vpack.c.bf16 %v812, %v811
        %816 = vmatprep.subr.bf16.mxu0 0
        %817 = vmatpush1.bf16.msra.mxu0 %v688
        %818 = vmatprep.subr.bf16.mxu0 0
        %819 = vmatpush1.bf16.msra.mxu0 %v689
        %820 = vmatprep.subr.bf16.mxu0 0
        %821 = vmatpush1.bf16.msra.mxu0 %v690
        %822 = vmatprep.subr.bf16.mxu0 0
        %823 = vmatpush1.bf16.msra.mxu0 %v691
        %824 = vmatprep.subr.bf16.mxu0 0
        %825 = vmatpush1.bf16.msra.mxu0 %v692
        %826 = vmatprep.subr.bf16.mxu0 0
        %827 = vmatpush1.bf16.msra.mxu0 %v693
        %828 = vmatprep.subr.bf16.mxu0 0
        %829 = vmatpush1.bf16.msra.mxu0 %v694
        %830 = vmatprep.subr.bf16.mxu0 0
        %831 = vmatpush1.bf16.msra.mxu0 %v695
        %832 = vmatprep.subr.bf16.mxu0 0
        %833 = vmatpush1.bf16.msra.mxu0 0
        %834 = vmatprep.subr.bf16.mxu0 0
        %835 = vmatpush1.bf16.msra.mxu0 0
        %836 = vmatprep.subr.bf16.mxu0 0
        %837 = vmatpush1.bf16.msra.mxu0 0
        %838 = vmatprep.subr.bf16.mxu0 0
        %839 = vmatpush1.bf16.msra.mxu0 0
        %840 = vmatprep.subr.bf16.mxu0 0
        %841 = vmatpush1.bf16.msra.mxu0 0
        %842 = vmatprep.subr.bf16.mxu0 0
        %843 = vmatpush1.bf16.msra.mxu0 0
        %844 = vmatprep.subr.bf16.mxu0 0
        %845 = vmatpush1.bf16.msra.mxu0 0
        %846 = vmatprep.subr.bf16.mxu0 0
        %847 = vmatpush1.bf16.msra.mxu0 0
        %848 = vmatprep.mubr.bf16.mxu0 0
        %849 = vmatmul.mubr.bf16.gmra.mrb[0].mxu0 %v815
        %v850 = vpop.f32.mrb[0].mxu0
        %v851 = vadd.f32 0.0, %v850
        %v852 = vpop.f32.mrb[0].mxu0
        %v853 = vpop.f32.mrb[0].mxu0
        %v854 = vadd.f32 0.0, %v853
        %v855 = vpop.f32.mrb[0].mxu0
        %856 = vdwg.mxu0
        %v857 = vsub.f32 %v813, %v851
        %v858 = vsub.f32 %v814, %v854
        %v859 = vmul.f32 %v635, 0.32517245
        %v860 = vmul.f32 %v637, 0.32517245
        %v861 = vsub.f32 0.0, %v859
        %v862 = vsub.f32 0.0, %v860
        %v863 = vmax.f32 %v861, %v857
        %v864 = vmax.f32 %v862, %v858
        %v865 = vmin.f32 %v859, %v863
        %v866 = vmin.f32 %v860, %v864
        %v867 = vsub.f32 %v857, %v865
        %v868 = vsub.f32 %v858, %v866
        %v869 = vadd.f32 %v867, %v626
        %v870 = vadd.f32 %v868, %v629
        %v871 = vpack.c.bf16 %v868, %v867
        %872 = vmatprep.subr.bf16.mxu0 0
        %873 = vmatpush1.bf16.msra.mxu0 %v688
        %874 = vmatprep.subr.bf16.mxu0 0
        %875 = vmatpush1.bf16.msra.mxu0 %v689
        %876 = vmatprep.subr.bf16.mxu0 0
        %877 = vmatpush1.bf16.msra.mxu0 %v690
        %878 = vmatprep.subr.bf16.mxu0 0
        %879 = vmatpush1.bf16.msra.mxu0 %v691
        %880 = vmatprep.subr.bf16.mxu0 0
        %881 = vmatpush1.bf16.msra.mxu0 %v692
        %882 = vmatprep.subr.bf16.mxu0 0
        %883 = vmatpush1.bf16.msra.mxu0 %v693
        %884 = vmatprep.subr.bf16.mxu0 0
        %885 = vmatpush1.bf16.msra.mxu0 %v694
        %886 = vmatprep.subr.bf16.mxu0 0
        %887 = vmatpush1.bf16.msra.mxu0 %v695
        %888 = vmatprep.subr.bf16.mxu0 0
        %889 = vmatpush1.bf16.msra.mxu0 0
        %890 = vmatprep.subr.bf16.mxu0 0
        %891 = vmatpush1.bf16.msra.mxu0 0
        %892 = vmatprep.subr.bf16.mxu0 0
        %893 = vmatpush1.bf16.msra.mxu0 0
        %894 = vmatprep.subr.bf16.mxu0 0
        %895 = vmatpush1.bf16.msra.mxu0 0
        %896 = vmatprep.subr.bf16.mxu0 0
        %897 = vmatpush1.bf16.msra.mxu0 0
        %898 = vmatprep.subr.bf16.mxu0 0
        %899 = vmatpush1.bf16.msra.mxu0 0
        %900 = vmatprep.subr.bf16.mxu0 0
        %901 = vmatpush1.bf16.msra.mxu0 0
        %902 = vmatprep.subr.bf16.mxu0 0
        %903 = vmatpush1.bf16.msra.mxu0 0
        %904 = vmatprep.mubr.bf16.mxu0 0
        %905 = vmatmul.mubr.bf16.gmra.mrb[0].mxu0 %v871
        %v906 = vpop.f32.mrb[0].mxu0
        %v907 = vadd.f32 0.0, %v906
        %v908 = vpop.f32.mrb[0].mxu0
        %v909 = vpop.f32.mrb[0].mxu0
        %v910 = vadd.f32 0.0, %v909
        %v911 = vpop.f32.mrb[0].mxu0
        %912 = vdwg.mxu0
        %v913 = vsub.f32 %v869, %v907
        %v914 = vsub.f32 %v870, %v910
        %v915 = vmul.f32 %v635, 0.2236068
        %v916 = vmul.f32 %v637, 0.2236068
        %v917 = vsub.f32 0.0, %v915
        %v918 = vsub.f32 0.0, %v916
        %v919 = vmax.f32 %v917, %v913
        %v920 = vmax.f32 %v918, %v914
        %v921 = vmin.f32 %v915, %v919
        %v922 = vmin.f32 %v916, %v920
        %v923 = vsub.f32 %v913, %v921
        %v924 = vsub.f32 %v914, %v922
        %v925 = vadd.f32 %v923, %v626
        %v926 = vadd.f32 %v924, %v629
        %v927 = vpack.c.bf16 %v924, %v923
        %928 = vmatprep.subr.bf16.mxu0 0
        %929 = vmatpush1.bf16.msra.mxu0 %v688
        %930 = vmatprep.subr.bf16.mxu0 0
        %931 = vmatpush1.bf16.msra.mxu0 %v689
        %932 = vmatprep.subr.bf16.mxu0 0
        %933 = vmatpush1.bf16.msra.mxu0 %v690
        %934 = vmatprep.subr.bf16.mxu0 0
        %935 = vmatpush1.bf16.msra.mxu0 %v691
        %936 = vmatprep.subr.bf16.mxu0 0
        %937 = vmatpush1.bf16.msra.mxu0 %v692
        %938 = vmatprep.subr.bf16.mxu0 0
        %939 = vmatpush1.bf16.msra.mxu0 %v693
        %940 = vmatprep.subr.bf16.mxu0 0
        %941 = vmatpush1.bf16.msra.mxu0 %v694
        %942 = vmatprep.subr.bf16.mxu0 0
        %943 = vmatpush1.bf16.msra.mxu0 %v695
        %944 = vmatprep.subr.bf16.mxu0 0
        %945 = vmatpush1.bf16.msra.mxu0 0
        %946 = vmatprep.subr.bf16.mxu0 0
        %947 = vmatpush1.bf16.msra.mxu0 0
        %948 = vmatprep.subr.bf16.mxu0 0
        %949 = vmatpush1.bf16.msra.mxu0 0
        %950 = vmatprep.subr.bf16.mxu0 0
        %951 = vmatpush1.bf16.msra.mxu0 0
        %952 = vmatprep.subr.bf16.mxu0 0
        %953 = vmatpush1.bf16.msra.mxu0 0
        %954 = vmatprep.subr.bf16.mxu0 0
        %955 = vmatpush1.bf16.msra.mxu0 0
        %956 = vmatprep.subr.bf16.mxu0 0
        %957 = vmatpush1.bf16.msra.mxu0 0
        %958 = vmatprep.subr.bf16.mxu0 0
        %959 = vmatpush1.bf16.msra.mxu0 0
        %960 = vmatprep.mubr.bf16.mxu0 0
        %961 = vmatmul.mubr.bf16.gmra.mrb[0].mxu0 %v927
        %v962 = vpop.f32.mrb[0].mxu0
        %v963 = vadd.f32 0.0, %v962
        %v964 = vpop.f32.mrb[0].mxu0
        %v965 = vpop.f32.mrb[0].mxu0
        %v966 = vadd.f32 0.0, %v965
        %v967 = vpop.f32.mrb[0].mxu0
        %968 = vdwg.mxu0
        %v969 = vsub.f32 %v925, %v963
        %v970 = vsub.f32 %v926, %v966
        %v971 = vmul.f32 %v635, 0.15376456
        %v972 = vmul.f32 %v637, 0.15376456
        %v973 = vsub.f32 0.0, %v971
        %v974 = vsub.f32 0.0, %v972
        %v975 = vmax.f32 %v973, %v969
        %v976 = vmax.f32 %v974, %v970
        %v977 = vmin.f32 %v971, %v975
        %v978 = vmin.f32 %v972, %v976
        %v979 = vsub.f32 %v969, %v977
        %v980 = vsub.f32 %v970, %v978
        %v981 = vadd.f32 %v979, %v626
        %v982 = vadd.f32 %v980, %v629
        %v983 = vpack.c.bf16 %v980, %v979
        %984 = vmatprep.subr.bf16.mxu0 0
        %985 = vmatpush1.bf16.msra.mxu0 %v688
        %986 = vmatprep.subr.bf16.mxu0 0
        %987 = vmatpush1.bf16.msra.mxu0 %v689
        %988 = vmatprep.subr.bf16.mxu0 0
        %989 = vmatpush1.bf16.msra.mxu0 %v690
        %990 = vmatprep.subr.bf16.mxu0 0
        %991 = vmatpush1.bf16.msra.mxu0 %v691
        %992 = vmatprep.subr.bf16.mxu0 0
        %993 = vmatpush1.bf16.msra.mxu0 %v692
        %994 = vmatprep.subr.bf16.mxu0 0
        %995 = vmatpush1.bf16.msra.mxu0 %v693
        %996 = vmatprep.subr.bf16.mxu0 0
        %997 = vmatpush1.bf16.msra.mxu0 %v694
        %998 = vmatprep.subr.bf16.mxu0 0
        %999 = vmatpush1.bf16.msra.mxu0 %v695
        %1000 = vmatprep.subr.bf16.mxu0 0
        %1001 = vmatpush1.bf16.msra.mxu0 0
        %1002 = vmatprep.subr.bf16.mxu0 0
        %1003 = vmatpush1.bf16.msra.mxu0 0
        %1004 = vmatprep.subr.bf16.mxu0 0
        %1005 = vmatpush1.bf16.msra.mxu0 0
        %1006 = vmatprep.subr.bf16.mxu0 0
        %1007 = vmatpush1.bf16.msra.mxu0 0
        %1008 = vmatprep.subr.bf16.mxu0 0
        %1009 = vmatpush1.bf16.msra.mxu0 0
        %1010 = vmatprep.subr.bf16.mxu0 0
        %1011 = vmatpush1.bf16.msra.mxu0 0
        %1012 = vmatprep.subr.bf16.mxu0 0
        %1013 = vmatpush1.bf16.msra.mxu0 0
        %1014 = vmatprep.subr.bf16.mxu0 0
        %1015 = vmatpush1.bf16.msra.mxu0 0
        %1016 = vmatprep.mubr.bf16.mxu0 0
        %1017 = vmatmul.mubr.bf16.gmra.mrb[0].mxu0 %v983
        %v1018 = vpop.f32.mrb[0].mxu0
        %v1019 = vadd.f32 0.0, %v1018
        %v1020 = vpop.f32.mrb[0].mxu0
        %v1021 = vpop.f32.mrb[0].mxu0
        %v1022 = vadd.f32 0.0, %v1021
        %v1023 = vpop.f32.mrb[0].mxu0
        %1024 = vdwg.mxu0
        %v1025 = vsub.f32 %v981, %v1019
        %v1026 = vsub.f32 %v982, %v1022
        %v1027 = vmul.f32 %v635, 0.10573713
        %v1028 = vmul.f32 %v637, 0.10573713
        %v1029 = vsub.f32 0.0, %v1027
        %v1030 = vsub.f32 0.0, %v1028
        %v1031 = vmax.f32 %v1029, %v1025
        %v1032 = vmax.f32 %v1030, %v1026
        %v1033 = vmin.f32 %v1027, %v1031
        %v1034 = vmin.f32 %v1028, %v1032
        %v1035 = vsub.f32 %v1025, %v1033
        %v1036 = vsub.f32 %v1026, %v1034
        %v1037 = vadd.f32 %v1035, %v626
        %v1038 = vadd.f32 %v1036, %v629
        %v1039 = vpack.c.bf16 %v1036, %v1035
        %1040 = vmatprep.subr.bf16.mxu0 0
        %1041 = vmatpush1.bf16.msra.mxu0 %v688
        %1042 = vmatprep.subr.bf16.mxu0 0
        %1043 = vmatpush1.bf16.msra.mxu0 %v689
        %1044 = vmatprep.subr.bf16.mxu0 0
        %1045 = vmatpush1.bf16.msra.mxu0 %v690
        %1046 = vmatprep.subr.bf16.mxu0 0
        %1047 = vmatpush1.bf16.msra.mxu0 %v691
        %1048 = vmatprep.subr.bf16.mxu0 0
        %1049 = vmatpush1.bf16.msra.mxu0 %v692
        %1050 = vmatprep.subr.bf16.mxu0 0
        %1051 = vmatpush1.bf16.msra.mxu0 %v693
        %1052 = vmatprep.subr.bf16.mxu0 0
        %1053 = vmatpush1.bf16.msra.mxu0 %v694
        %1054 = vmatprep.subr.bf16.mxu0 0
        %1055 = vmatpush1.bf16.msra.mxu0 %v695
        %1056 = vmatprep.subr.bf16.mxu0 0
        %1057 = vmatpush1.bf16.msra.mxu0 0
        %1058 = vmatprep.subr.bf16.mxu0 0
        %1059 = vmatpush1.bf16.msra.mxu0 0
        %1060 = vmatprep.subr.bf16.mxu0 0
        %1061 = vmatpush1.bf16.msra.mxu0 0
        %1062 = vmatprep.subr.bf16.mxu0 0
        %1063 = vmatpush1.bf16.msra.mxu0 0
        %1064 = vmatprep.subr.bf16.mxu0 0
        %1065 = vmatpush1.bf16.msra.mxu0 0
        %1066 = vmatprep.subr.bf16.mxu0 0
        %1067 = vmatpush1.bf16.msra.mxu0 0
        %1068 = vmatprep.subr.bf16.mxu0 0
        %1069 = vmatpush1.bf16.msra.mxu0 0
        %1070 = vmatprep.subr.bf16.mxu0 0
        %1071 = vmatpush1.bf16.msra.mxu0 0
        %1072 = vmatprep.mubr.bf16.mxu0 0
        %1073 = vmatmul.mubr.bf16.gmra.mrb[0].mxu0 %v1039
        %v1074 = vpop.f32.mrb[0].mxu0
        %v1075 = vadd.f32 0.0, %v1074
        %v1076 = vpop.f32.mrb[0].mxu0
        %v1077 = vpop.f32.mrb[0].mxu0
        %v1078 = vadd.f32 0.0, %v1077
        %v1079 = vpop.f32.mrb[0].mxu0
        %1080 = vdwg.mxu0
        %v1081 = vsub.f32 %v1037, %v1075
        %v1082 = vsub.f32 %v1038, %v1078
        %v1083 = vmul.f32 %v635, 0.072710775
        %v1084 = vmul.f32 %v637, 0.072710775
        %v1085 = vsub.f32 0.0, %v1083
        %v1086 = vsub.f32 0.0, %v1084
        %v1087 = vmax.f32 %v1085, %v1081
        %v1088 = vmax.f32 %v1086, %v1082
        %v1089 = vmin.f32 %v1083, %v1087
        %v1090 = vmin.f32 %v1084, %v1088
        %v1091 = vsub.f32 %v1081, %v1089
        %v1092 = vsub.f32 %v1082, %v1090
        %v1093 = vadd.f32 %v1091, %v626
        %v1094 = vadd.f32 %v1092, %v629
        %v1095 = vpack.c.bf16 %v1092, %v1091
        %1096 = vmatprep.subr.bf16.mxu0 0
        %1097 = vmatpush1.bf16.msra.mxu0 %v688
        %1098 = vmatprep.subr.bf16.mxu0 0
        %1099 = vmatpush1.bf16.msra.mxu0 %v689
        %1100 = vmatprep.subr.bf16.mxu0 0
        %1101 = vmatpush1.bf16.msra.mxu0 %v690
        %1102 = vmatprep.subr.bf16.mxu0 0
        %1103 = vmatpush1.bf16.msra.mxu0 %v691
        %1104 = vmatprep.subr.bf16.mxu0 0
        %1105 = vmatpush1.bf16.msra.mxu0 %v692
        %1106 = vmatprep.subr.bf16.mxu0 0
        %1107 = vmatpush1.bf16.msra.mxu0 %v693
        %1108 = vmatprep.subr.bf16.mxu0 0
        %1109 = vmatpush1.bf16.msra.mxu0 %v694
        %1110 = vmatprep.subr.bf16.mxu0 0
        %1111 = vmatpush1.bf16.msra.mxu0 %v695
        %1112 = vmatprep.subr.bf16.mxu0 0
        %1113 = vmatpush1.bf16.msra.mxu0 0
        %1114 = vmatprep.subr.bf16.mxu0 0
        %1115 = vmatpush1.bf16.msra.mxu0 0
        %1116 = vmatprep.subr.bf16.mxu0 0
        %1117 = vmatpush1.bf16.msra.mxu0 0
        %1118 = vmatprep.subr.bf16.mxu0 0
        %1119 = vmatpush1.bf16.msra.mxu0 0
        %1120 = vmatprep.subr.bf16.mxu0 0
        %1121 = vmatpush1.bf16.msra.mxu0 0
        %1122 = vmatprep.subr.bf16.mxu0 0
        %1123 = vmatpush1.bf16.msra.mxu0 0
        %1124 = vmatprep.subr.bf16.mxu0 0
        %1125 = vmatpush1.bf16.msra.mxu0 0
        %1126 = vmatprep.subr.bf16.mxu0 0
        %1127 = vmatpush1.bf16.msra.mxu0 0
        %1128 = vmatprep.mubr.bf16.mxu0 0
        %1129 = vmatmul.mubr.bf16.gmra.mrb[0].mxu0 %v1095
        %v1130 = vpop.f32.mrb[0].mxu0
        %v1131 = vadd.f32 0.0, %v1130
        %v1132 = vpop.f32.mrb[0].mxu0
        %v1133 = vpop.f32.mrb[0].mxu0
        %v1134 = vadd.f32 0.0, %v1133
        %v1135 = vpop.f32.mrb[0].mxu0
        %1136 = vdwg.mxu0
        %v1137 = vsub.f32 %v1093, %v1131
        %v1138 = vsub.f32 %v1094, %v1134
        %v1139 = vmul.f32 %v635, 0.05
        %v1140 = vmul.f32 %v637, 0.05
        %v1141 = vsub.f32 0.0, %v1139
        %v1142 = vsub.f32 0.0, %v1140
        %v1143 = vmax.f32 %v1141, %v1137
        %v1144 = vmax.f32 %v1142, %v1138
        %v1145 = vmin.f32 %v1139, %v1143
        %v1146 = vmin.f32 %v1140, %v1144
        %v1147 = vsub.f32 %v1137, %v1145
        %v1148 = vsub.f32 %v1138, %v1146
        %v1149 = vld [vmem:[%s314] sm:$0x1]
        %v1150 = vadd.f32 %v1147, %v1148
        %v1151 = vrot.slane %v1150, 4
        %v1152 = vadd.f32 %v1150, %v1151
        %v1153 = vrot.slane %v1152, 2
        %v1154 = vadd.f32 %v1152, %v1153
        %v1155 = vrot.slane %v1154, 1
        %v1156 = vadd.f32 %v1154, %v1155
        %v1157 = vadd.f32 %v1149, %v1156
        %1158 = vst [vmem:[%s314] sm:$0x1] %v1157
        %s1159 = sand.u32 %s156, 1
        %s1160 = scalar_lea.sflag [#allocation4], %s1159
        %s1161 = sand.u32 %s156, 1
        %s1162 = scalar_lea.vmem [#allocation11], %s1161
        // Predicated region
        $region65: #{tpu_custom_call.1} parent=39 // pred_check
          %p1163 = pneg %p166
        $region66: #{tpu_custom_call.1} parent=39 // pred_check_branch
          %1165 = sbr.rel (%p1163) target = $region68
        $region67: #{tpu_custom_call.1} parent=39 // pred_region
          %s1167 = ssub.s32 16, 16
          %1168 = vsyncadd %s1160, %s1167
          %s1169 = smul.addr %s28, 16
          %s1170 = scalar_lea.hbm %s5, %s1169
          %s1172 = sshll.u32 %s1162, 4
          %s1173 = int_to_ptr.vmem [resolvable:$true] %s1172
          %1175 = dma.vmem_to_hbm [thread:$0]  %s1173, 16, %s1170, %s1160
        $region68: #{tpu_custom_call.1} parent=39 // pred_fallthru
          _
      $region40: #{tpu_custom_call.1} parent=5 // pred_fallthru
        _
      %p1176 = scmp.le.s32.totalorder 2, %s19
      // Predicated region
      $region69: #{tpu_custom_call.1} parent=5 // pred_check
        %p1177 = pneg %p1176
      $region70: #{tpu_custom_call.1} parent=5 // pred_check_branch
        %1179 = sbr.rel (%p1177) target = $region72
      $region71: #{tpu_custom_call.1} parent=5 // pred_region
        %s1180 = ssub.s32 %s19, 2
        // Predicated region
        $region73: #{tpu_custom_call.1} parent=71 // pred_check
          %p1181 = pneg %p172
        $region74: #{tpu_custom_call.1} parent=71 // pred_check_branch
          %1183 = sbr.rel (%p1181) target = $region76
        $region75: #{tpu_custom_call.1} parent=71 // pred_region
          %s1184 = sand.u32 %s157, 1
          %s1185 = scalar_lea.sflag [#allocation4], %s1184
          %s1186 = sand.u32 %s157, 1
          %s1187 = scalar_lea.vmem [#allocation11], %s1186
          %1188 = dma.done %s1185, 16
        $region76: #{tpu_custom_call.1} parent=71 // pred_fallthru
          _
      $region72: #{tpu_custom_call.1} parent=5 // pred_fallthru
        _
    $region6: #{tpu_custom_call.1} parent=1 // loop_footer
      %s23 = sadd.s32 1, %s19
    $region7: #{tpu_custom_call.1} parent=1 // loop_footer_branch
      %18 = sbr.rel target = $region3
    $region8: #{tpu_custom_call.1} parent=1 // loop_exit
      _
    %1189 = vsyncpa [#allocation3], 1
    %s1190 = scalar_lea.sflag [#allocation3], 1
    %1191 = vsyncpa %s1190, 1
    %1192 = vsyncpa [#allocation6], 1
    %1193 = vsyncpa [#allocation9], 1
    %1194 = vsyncpa [#allocation4], 1
    %s1195 = scalar_lea.sflag [#allocation4], 1
    %1196 = vsyncpa %s1195, 1

</llo_original>
